<compile_context>
chip_gen: v6e
topology: v6e:2x2x1
jax: 0.10.0
libtpu: 0.0.40
codegen_flags: <defaults>
</compile_context>

<pallas_src>
import functools

import jax
import jax.numpy as jnp
import numpy as np
from jax.experimental import pallas as pl
from jax.experimental.pallas import tpu as pltpu

IN_DIM = 32
OUT_DIM = 64
LN_EPS = 1e-5
NEG_SLOPE = 0.2
TILE_ROWS = 1024  # folded rows per grid step = 2048 original batch rows.


def _round_up(n, m):
    return ((n + m - 1) // m) * m


def fcres_kernel(x_ref, w1s_ref, w2_ref, w3_ref, gb_ref, o_ref):
    # Lane layout of every (tile, 128) intermediate: [even-row features | odd-row features].
    lane = jax.lax.broadcasted_iota(jnp.int32, (1, 2 * OUT_DIM), 1)
    in_even = lane < OUT_DIM
    gb = gb_ref[...]  # (6, 128): [g1; b1; g2; b2; g3; b3], each tiled [gamma|gamma].

    def seg_layer_norm(h, g, b):
        # Independent LayerNorm over lanes [0:64) and [64:128) of each row.
        inv_d = 1.0 / OUT_DIM
        s_all = jnp.sum(h, axis=-1, keepdims=True)
        s_even = jnp.sum(jnp.where(in_even, h, 0.0), axis=-1, keepdims=True)
        mu = jnp.where(in_even, s_even, s_all - s_even) * inv_d
        hh = h * h
        q_all = jnp.sum(hh, axis=-1, keepdims=True)
        q_even = jnp.sum(jnp.where(in_even, hh, 0.0), axis=-1, keepdims=True)
        msq = jnp.where(in_even, q_even, q_all - q_even) * inv_d
        var = msq - mu * mu
        return (h - mu) * jax.lax.rsqrt(var + LN_EPS) * g + b

    def leaky_relu(h):
        return jnp.where(h >= 0, h, NEG_SLOPE * h)

    # Fused first matmul: [h_even | h_odd | res_even | res_odd] in one
    # (64, 256) bf16 RHS. Slices at lane 128 are vreg-aligned (no relayout).
    z = jnp.dot(x_ref[...], w1s_ref[...], preferred_element_type=jnp.float32)
    h = z[:, : 2 * OUT_DIM]
    res = z[:, 2 * OUT_DIM:]

    # block 1: leaky_relu(bn1(linear1(x)))
    h = leaky_relu(seg_layer_norm(h, gb[0:1], gb[1:2]))
    # block 2: leaky_relu(bn2(linear2(h)))
    h = jnp.dot(h.astype(jnp.bfloat16), w2_ref[...], preferred_element_type=jnp.float32)
    h = leaky_relu(seg_layer_norm(h, gb[2:3], gb[3:4]))
    # block 3: bn3(linear3(h))
    h = jnp.dot(h.astype(jnp.bfloat16), w3_ref[...], preferred_element_type=jnp.float32)
    h = seg_layer_norm(h, gb[4:5], gb[5:6])

    # residual add + final leaky_relu; dropout(p=0.0) is the identity.
    o_ref[...] = leaky_relu(h + res).astype(o_ref.dtype)


@functools.partial(jax.jit, static_argnames=("tile_rows", "out_dtype"))
def fcres_block(x, w1_t, w2_t, w3_t, sel, gammas, betas, *,
                tile_rows=TILE_ROWS, out_dtype=jnp.float32):
    """x: (B, IN_DIM). w*_t: Linear weights pre-transposed to (in, out).
    sel: (IN_DIM, OUT_DIM) nearest-interp 0/1 matrix. gammas/betas: (3, OUT_DIM)."""
    B = x.shape[0]
    assert x.shape[1] == IN_DIM

    rows_needed = -(-B // 2)  # folded rows (two batch rows per folded row)
    # Tile sized for DMA / per-step-overhead amortization; keep >=2 grid steps
    # when the batch is big enough (v7x megacore) and sublane dim a multiple of 8.
    tile = min(tile_rows, _round_up(max(rows_needed // 2, 8), 8))
    grid_n = -(-rows_needed // tile)
    rows_pad = grid_n * tile
    b_pad = 2 * rows_pad

    # bf16 input in the wrapper (halves input DMA bytes); zero-pad ragged batches.
    xb = x.astype(jnp.bfloat16)
    if b_pad != B:
        xb = jnp.concatenate(
            [xb, jnp.zeros((b_pad - B, IN_DIM), jnp.bfloat16)], axis=0)
    # Fold consecutive batch-row pairs into lanes: (b_pad, 32) -> (rows_pad, 64).
    x_f = xb.reshape(rows_pad, 2 * IN_DIM)

    # Block-diagonal bf16 weights (resident in VMEM via constant index_maps).
    zi = jnp.zeros((IN_DIM, OUT_DIM), jnp.float32)
    zo = jnp.zeros((OUT_DIM, OUT_DIM), jnp.float32)
    # Columns of w1s: [h_even | h_odd | res_even | res_odd].
    w1s = jnp.concatenate([
        jnp.concatenate([w1_t, zi, sel, zi], axis=1),
        jnp.concatenate([zi, w1_t, zi, sel], axis=1),
    ], axis=0).astype(jnp.bfloat16)                       # (64, 256)
    w2b = jnp.concatenate([
        jnp.concatenate([w2_t, zo], axis=1),
        jnp.concatenate([zo, w2_t], axis=1),
    ], axis=0).astype(jnp.bfloat16)                       # (128, 128)
    w3b = jnp.concatenate([
        jnp.concatenate([w3_t, zo], axis=1),
        jnp.concatenate([zo, w3_t], axis=1),
    ], axis=0).astype(jnp.bfloat16)                       # (128, 128)

    # Pack LayerNorm affine params into one streamed operand, tiled to 128 lanes.
    gb = jnp.stack([gammas[0], betas[0], gammas[1], betas[1], gammas[2], betas[2]])
    gb = jnp.concatenate([gb, gb], axis=1)                # (6, 128)

    out_f = pl.pallas_call(
        fcres_kernel,
        out_shape=jax.ShapeDtypeStruct((rows_pad, 2 * OUT_DIM), out_dtype),
        grid_spec=pltpu.PrefetchScalarGridSpec(
            num_scalar_prefetch=0,
            grid=(grid_n,),
            in_specs=[
                pl.BlockSpec((tile, 2 * IN_DIM), lambda i: (i, 0)),
                pl.BlockSpec((2 * IN_DIM, 4 * OUT_DIM), lambda i: (0, 0)),
                pl.BlockSpec((2 * OUT_DIM, 2 * OUT_DIM), lambda i: (0, 0)),
                pl.BlockSpec((2 * OUT_DIM, 2 * OUT_DIM), lambda i: (0, 0)),
                pl.BlockSpec((6, 2 * OUT_DIM), lambda i: (0, 0)),
            ],
            out_specs=pl.BlockSpec((tile, 2 * OUT_DIM), lambda i: (i, 0)),
        ),
        compiler_params=pltpu.CompilerParams(
            dimension_semantics=("parallel",),  # megacore split on v7x
        ),
    )(x_f, w1s, w2b, w3b, gb)

    # Un-fold back to (B, OUT_DIM); reshape/slice happen outside the kernel.
    return out_f.reshape(b_pad, OUT_DIM)[:B]


def kaiming_normal(key, out_dim, in_dim, a=0.2):
    # nn.init.kaiming_normal_(w, a=0.2, mode='fan_in', nonlinearity='leaky_relu')
    gain = np.sqrt(2.0 / (1.0 + a * a))
    std = gain / np.sqrt(in_dim)
    return jax.random.normal(key, (out_dim, in_dim), dtype=jnp.float32) * std


def nearest_interp_matrix(in_dim, out_dim):
    # S[i, j] = 1 iff nearest-source index of output j is i (PyTorch 'nearest':
    # src = floor(j * in_dim / out_dim)).
    j = np.arange(out_dim)
    src = np.minimum((j * in_dim) // out_dim, in_dim - 1)
    S = np.zeros((in_dim, out_dim), dtype=np.float32)
    S[src, j] = 1.0
    return jnp.asarray(S)


def reference_forward(x, w1, w2, w3, gammas, betas):
    """Pure-JAX reference with PyTorch forward semantics and the same
    bf16-in / f32-accumulate matmul precision choices as the kernel."""
    bf = jnp.bfloat16

    def ln(h, g, b):
        mu = h.mean(-1, keepdims=True)
        var = ((h - mu) ** 2).mean(-1, keepdims=True)
        return (h - mu) / jnp.sqrt(var + LN_EPS) * g + b

    def lrelu(h):
        return jnp.where(h >= 0, h, NEG_SLOPE * h)

    def mm(a, w):
        return jnp.dot(a.astype(bf), w.T.astype(bf),
                       preferred_element_type=jnp.float32)

    h = lrelu(ln(mm(x, w1), gammas[0], betas[0]))
    h = lrelu(ln(mm(h, w2), gammas[1], betas[1]))
    h = ln(mm(h, w3), gammas[2], betas[2])
    src = np.minimum((np.arange(OUT_DIM) * IN_DIM) // OUT_DIM, IN_DIM - 1)
    # residual goes through the bf16 fused matmul in-kernel -> bf16-rounded x
    res = x.astype(bf).astype(jnp.float32)[:, src]
    return lrelu(h + res)


if __name__ == "__main__":
    key = jax.random.PRNGKey(0)
    kx, k1, k2, k3, kg, kb = jax.random.split(key, 6)

    B = 500  # not a multiple of the tile -> exercises the ragged-batch padding path
    x = jax.random.normal(kx, (B, IN_DIM), dtype=jnp.float32)

    # PyTorch Linear weights are (out, in); the kernel consumes (in, out).
    w1 = kaiming_normal(k1, OUT_DIM, IN_DIM)
    w2 = kaiming_normal(k2, OUT_DIM, OUT_DIM)
    w3 = kaiming_normal(k3, OUT_DIM, OUT_DIM)
    sel = nearest_interp_matrix(IN_DIM, OUT_DIM)

    # LayerNorm affine params (_reset_parameters gives weight=1, bias=0; use
    # perturbed values here to exercise the gamma/beta path).
    gammas = 1.0 + 0.1 * jax.random.normal(kg, (3, OUT_DIM), dtype=jnp.float32)
    betas = 0.1 * jax.random.normal(kb, (3, OUT_DIM), dtype=jnp.float32)

    out = fcres_block(x, w1.T, w2.T, w3.T, sel, gammas, betas)
    out = jax.block_until_ready(out)

    ref = reference_forward(x, w1, w2, w3, gammas, betas)
    np.testing.assert_allclose(np.asarray(out), np.asarray(ref),
                               rtol=2e-3, atol=2e-3)

    print("KERNEL_OK")
</pallas_src>

<mosaic_0001>
module attributes {stable_mosaic.version = 11 : i64} {
  func.func @fcres_kernel(%arg0: i32, %arg1: memref<128x64xbf16, #tpu.memory_space<vmem>>, %arg2: memref<64x256xbf16, #tpu.memory_space<vmem>>, %arg3: memref<128x128xbf16, #tpu.memory_space<vmem>>, %arg4: memref<128x128xbf16, #tpu.memory_space<vmem>>, %arg5: memref<6x128xf32, #tpu.memory_space<vmem>>, %arg6: memref<128x128xf32, #tpu.memory_space<vmem>>) attributes {dimension_semantics = [#tpu.dimension_semantics<parallel>], iteration_bounds = array<i64: 2>, scalar_prefetch = 0 : i64, scratch_operands = 0 : i64, tpu.core_type = #tpu.core_type<tc>, window_params = [{transform_indices = @transform_0, window_bounds = array<i64: 128, 64>}, {pipeline_mode = #tpu.pipeline_mode<synchronous>, transform_indices = @transform_1, window_bounds = array<i64: 64, 256>}, {pipeline_mode = #tpu.pipeline_mode<synchronous>, transform_indices = @transform_2, window_bounds = array<i64: 128, 128>}, {pipeline_mode = #tpu.pipeline_mode<synchronous>, transform_indices = @transform_3, window_bounds = array<i64: 128, 128>}, {pipeline_mode = #tpu.pipeline_mode<synchronous>, transform_indices = @transform_4, window_bounds = array<i64: 6, 128>}, {transform_indices = @transform_5, window_bounds = array<i64: 128, 128>}]} {
    %0 = tpu.iota {dimensions = array<i32: 1>} : vector<1x128xi32>
    %c64_i32 = arith.constant 64 : i32
    %1 = vector.broadcast %c64_i32 : i32 to vector<1x128xi32>
    %2 = arith.cmpi slt, %0, %1 : vector<1x128xi32>
    %c0 = arith.constant 0 : index
    %c0_0 = arith.constant 0 : index
    %3 = vector.load %arg5[%c0, %c0_0] : memref<6x128xf32, #tpu.memory_space<vmem>>, vector<6x128xf32>
    %c0_1 = arith.constant 0 : index
    %c0_2 = arith.constant 0 : index
    %4 = vector.load %arg1[%c0_1, %c0_2] : memref<128x64xbf16, #tpu.memory_space<vmem>>, vector<128x64xbf16>
    %c0_3 = arith.constant 0 : index
    %c0_4 = arith.constant 0 : index
    %5 = vector.load %arg2[%c0_3, %c0_4] : memref<64x256xbf16, #tpu.memory_space<vmem>>, vector<64x256xbf16>
    %cst = arith.constant dense<0.000000e+00> : vector<128x256xf32>
    %6 = tpu.matmul %4, %5, %cst {dimension_numbers = #tpu.dot_dimension_numbers<[1], [0], [0], [1], [0, 0, 1, 1], [], []>} : vector<128x64xbf16>, vector<64x256xbf16>, vector<128x256xf32> -> vector<128x256xf32>
    %7 = vector.extract_strided_slice %6 {offsets = [0, 0], sizes = [128, 128], strides = [1, 1]} : vector<128x256xf32> to vector<128x128xf32>
    %8 = vector.extract_strided_slice %6 {offsets = [0, 128], sizes = [128, 128], strides = [1, 1]} : vector<128x256xf32> to vector<128x128xf32>
    %9 = vector.extract_strided_slice %3 {offsets = [0, 0], sizes = [1, 128], strides = [1, 1]} : vector<6x128xf32> to vector<1x128xf32>
    %10 = vector.extract_strided_slice %3 {offsets = [1, 0], sizes = [1, 128], strides = [1, 1]} : vector<6x128xf32> to vector<1x128xf32>
    %cst_5 = arith.constant dense<0.000000e+00> : vector<128xf32>
    %11 = vector.multi_reduction <add>, %7, %cst_5 [1] : vector<128x128xf32> to vector<128xf32>
    %12 = vector.shape_cast %11 : vector<128xf32> to vector<128x1xf32>
    %cst_6 = arith.constant 0.000000e+00 : f32
    %13 = vector.shape_cast %2 : vector<1x128xi1> to vector<1x128xi1>
    %14 = vector.broadcast %13 : vector<1x128xi1> to vector<128x128xi1>
    %15 = vector.broadcast %cst_6 : f32 to vector<128x128xf32>
    %16 = arith.select %14, %7, %15 : vector<128x128xi1>, vector<128x128xf32>
    %cst_7 = arith.constant dense<0.000000e+00> : vector<128xf32>
    %17 = vector.multi_reduction <add>, %16, %cst_7 [1] : vector<128x128xf32> to vector<128xf32>
    %18 = vector.shape_cast %17 : vector<128xf32> to vector<128x1xf32>
    %19 = arith.subf %12, %18 : vector<128x1xf32>
    %20 = vector.shape_cast %2 : vector<1x128xi1> to vector<1x128xi1>
    %21 = vector.broadcast %20 : vector<1x128xi1> to vector<128x128xi1>
    %22 = vector.shape_cast %18 : vector<128x1xf32> to vector<128x1xf32>
    %23 = vector.broadcast %22 : vector<128x1xf32> to vector<128x128xf32>
    %24 = vector.shape_cast %19 : vector<128x1xf32> to vector<128x1xf32>
    %25 = vector.broadcast %24 : vector<128x1xf32> to vector<128x128xf32>
    %26 = arith.select %21, %23, %25 : vector<128x128xi1>, vector<128x128xf32>
    %cst_8 = arith.constant 1.562500e-02 : f32
    %27 = vector.broadcast %cst_8 : f32 to vector<128x128xf32>
    %28 = arith.mulf %26, %27 : vector<128x128xf32>
    %29 = arith.mulf %7, %7 : vector<128x128xf32>
    %cst_9 = arith.constant dense<0.000000e+00> : vector<128xf32>
    %30 = vector.multi_reduction <add>, %29, %cst_9 [1] : vector<128x128xf32> to vector<128xf32>
    %31 = vector.shape_cast %30 : vector<128xf32> to vector<128x1xf32>
    %cst_10 = arith.constant 0.000000e+00 : f32
    %32 = vector.shape_cast %2 : vector<1x128xi1> to vector<1x128xi1>
    %33 = vector.broadcast %32 : vector<1x128xi1> to vector<128x128xi1>
    %34 = vector.broadcast %cst_10 : f32 to vector<128x128xf32>
    %35 = arith.select %33, %29, %34 : vector<128x128xi1>, vector<128x128xf32>
    %cst_11 = arith.constant dense<0.000000e+00> : vector<128xf32>
    %36 = vector.multi_reduction <add>, %35, %cst_11 [1] : vector<128x128xf32> to vector<128xf32>
    %37 = vector.shape_cast %36 : vector<128xf32> to vector<128x1xf32>
    %38 = arith.subf %31, %37 : vector<128x1xf32>
    %39 = vector.shape_cast %2 : vector<1x128xi1> to vector<1x128xi1>
    %40 = vector.broadcast %39 : vector<1x128xi1> to vector<128x128xi1>
    %41 = vector.shape_cast %37 : vector<128x1xf32> to vector<128x1xf32>
    %42 = vector.broadcast %41 : vector<128x1xf32> to vector<128x128xf32>
    %43 = vector.shape_cast %38 : vector<128x1xf32> to vector<128x1xf32>
    %44 = vector.broadcast %43 : vector<128x1xf32> to vector<128x128xf32>
    %45 = arith.select %40, %42, %44 : vector<128x128xi1>, vector<128x128xf32>
    %cst_12 = arith.constant 1.562500e-02 : f32
    %46 = vector.broadcast %cst_12 : f32 to vector<128x128xf32>
    %47 = arith.mulf %45, %46 : vector<128x128xf32>
    %48 = arith.mulf %28, %28 : vector<128x128xf32>
    %49 = arith.subf %47, %48 : vector<128x128xf32>
    %50 = arith.subf %7, %28 : vector<128x128xf32>
    %cst_13 = arith.constant 9.99999974E-6 : f32
    %51 = vector.broadcast %cst_13 : f32 to vector<128x128xf32>
    %52 = arith.addf %49, %51 : vector<128x128xf32>
    %53 = math.rsqrt %52 : vector<128x128xf32>
    %54 = arith.mulf %50, %53 : vector<128x128xf32>
    %55 = vector.broadcast %9 : vector<1x128xf32> to vector<128x128xf32>
    %56 = arith.mulf %54, %55 : vector<128x128xf32>
    %57 = vector.broadcast %10 : vector<1x128xf32> to vector<128x128xf32>
    %58 = arith.addf %56, %57 : vector<128x128xf32>
    %cst_14 = arith.constant 0.000000e+00 : f32
    %59 = vector.broadcast %cst_14 : f32 to vector<128x128xf32>
    %60 = arith.cmpf oge, %58, %59 : vector<128x128xf32>
    %cst_15 = arith.constant 2.000000e-01 : f32
    %61 = vector.broadcast %cst_15 : f32 to vector<128x128xf32>
    %62 = arith.mulf %61, %58 : vector<128x128xf32>
    %63 = arith.select %60, %58, %62 : vector<128x128xi1>, vector<128x128xf32>
    %64 = arith.truncf %63 : vector<128x128xf32> to vector<128x128xbf16>
    %c0_16 = arith.constant 0 : index
    %c0_17 = arith.constant 0 : index
    %65 = vector.load %arg3[%c0_16, %c0_17] : memref<128x128xbf16, #tpu.memory_space<vmem>>, vector<128x128xbf16>
    %cst_18 = arith.constant dense<0.000000e+00> : vector<128x128xf32>
    %66 = tpu.matmul %64, %65, %cst_18 {dimension_numbers = #tpu.dot_dimension_numbers<[1], [0], [0], [1], [0, 0, 1, 1], [], []>} : vector<128x128xbf16>, vector<128x128xbf16>, vector<128x128xf32> -> vector<128x128xf32>
    %67 = vector.extract_strided_slice %3 {offsets = [2, 0], sizes = [1, 128], strides = [1, 1]} : vector<6x128xf32> to vector<1x128xf32>
    %68 = vector.extract_strided_slice %3 {offsets = [3, 0], sizes = [1, 128], strides = [1, 1]} : vector<6x128xf32> to vector<1x128xf32>
    %cst_19 = arith.constant dense<0.000000e+00> : vector<128xf32>
    %69 = vector.multi_reduction <add>, %66, %cst_19 [1] : vector<128x128xf32> to vector<128xf32>
    %70 = vector.shape_cast %69 : vector<128xf32> to vector<128x1xf32>
    %cst_20 = arith.constant 0.000000e+00 : f32
    %71 = vector.shape_cast %2 : vector<1x128xi1> to vector<1x128xi1>
    %72 = vector.broadcast %71 : vector<1x128xi1> to vector<128x128xi1>
    %73 = vector.broadcast %cst_20 : f32 to vector<128x128xf32>
    %74 = arith.select %72, %66, %73 : vector<128x128xi1>, vector<128x128xf32>
    %cst_21 = arith.constant dense<0.000000e+00> : vector<128xf32>
    %75 = vector.multi_reduction <add>, %74, %cst_21 [1] : vector<128x128xf32> to vector<128xf32>
    %76 = vector.shape_cast %75 : vector<128xf32> to vector<128x1xf32>
    %77 = arith.subf %70, %76 : vector<128x1xf32>
    %78 = vector.shape_cast %2 : vector<1x128xi1> to vector<1x128xi1>
    %79 = vector.broadcast %78 : vector<1x128xi1> to vector<128x128xi1>
    %80 = vector.shape_cast %76 : vector<128x1xf32> to vector<128x1xf32>
    %81 = vector.broadcast %80 : vector<128x1xf32> to vector<128x128xf32>
    %82 = vector.shape_cast %77 : vector<128x1xf32> to vector<128x1xf32>
    %83 = vector.broadcast %82 : vector<128x1xf32> to vector<128x128xf32>
    %84 = arith.select %79, %81, %83 : vector<128x128xi1>, vector<128x128xf32>
    %cst_22 = arith.constant 1.562500e-02 : f32
    %85 = vector.broadcast %cst_22 : f32 to vector<128x128xf32>
    %86 = arith.mulf %84, %85 : vector<128x128xf32>
    %87 = arith.mulf %66, %66 : vector<128x128xf32>
    %cst_23 = arith.constant dense<0.000000e+00> : vector<128xf32>
    %88 = vector.multi_reduction <add>, %87, %cst_23 [1] : vector<128x128xf32> to vector<128xf32>
    %89 = vector.shape_cast %88 : vector<128xf32> to vector<128x1xf32>
    %cst_24 = arith.constant 0.000000e+00 : f32
    %90 = vector.shape_cast %2 : vector<1x128xi1> to vector<1x128xi1>
    %91 = vector.broadcast %90 : vector<1x128xi1> to vector<128x128xi1>
    %92 = vector.broadcast %cst_24 : f32 to vector<128x128xf32>
    %93 = arith.select %91, %87, %92 : vector<128x128xi1>, vector<128x128xf32>
    %cst_25 = arith.constant dense<0.000000e+00> : vector<128xf32>
    %94 = vector.multi_reduction <add>, %93, %cst_25 [1] : vector<128x128xf32> to vector<128xf32>
    %95 = vector.shape_cast %94 : vector<128xf32> to vector<128x1xf32>
    %96 = arith.subf %89, %95 : vector<128x1xf32>
    %97 = vector.shape_cast %2 : vector<1x128xi1> to vector<1x128xi1>
    %98 = vector.broadcast %97 : vector<1x128xi1> to vector<128x128xi1>
    %99 = vector.shape_cast %95 : vector<128x1xf32> to vector<128x1xf32>
    %100 = vector.broadcast %99 : vector<128x1xf32> to vector<128x128xf32>
    %101 = vector.shape_cast %96 : vector<128x1xf32> to vector<128x1xf32>
    %102 = vector.broadcast %101 : vector<128x1xf32> to vector<128x128xf32>
    %103 = arith.select %98, %100, %102 : vector<128x128xi1>, vector<128x128xf32>
    %cst_26 = arith.constant 1.562500e-02 : f32
    %104 = vector.broadcast %cst_26 : f32 to vector<128x128xf32>
    %105 = arith.mulf %103, %104 : vector<128x128xf32>
    %106 = arith.mulf %86, %86 : vector<128x128xf32>
    %107 = arith.subf %105, %106 : vector<128x128xf32>
    %108 = arith.subf %66, %86 : vector<128x128xf32>
    %cst_27 = arith.constant 9.99999974E-6 : f32
    %109 = vector.broadcast %cst_27 : f32 to vector<128x128xf32>
    %110 = arith.addf %107, %109 : vector<128x128xf32>
    %111 = math.rsqrt %110 : vector<128x128xf32>
    %112 = arith.mulf %108, %111 : vector<128x128xf32>
    %113 = vector.broadcast %67 : vector<1x128xf32> to vector<128x128xf32>
    %114 = arith.mulf %112, %113 : vector<128x128xf32>
    %115 = vector.broadcast %68 : vector<1x128xf32> to vector<128x128xf32>
    %116 = arith.addf %114, %115 : vector<128x128xf32>
    %cst_28 = arith.constant 0.000000e+00 : f32
    %117 = vector.broadcast %cst_28 : f32 to vector<128x128xf32>
    %118 = arith.cmpf oge, %116, %117 : vector<128x128xf32>
    %cst_29 = arith.constant 2.000000e-01 : f32
    %119 = vector.broadcast %cst_29 : f32 to vector<128x128xf32>
    %120 = arith.mulf %119, %116 : vector<128x128xf32>
    %121 = arith.select %118, %116, %120 : vector<128x128xi1>, vector<128x128xf32>
    %122 = arith.truncf %121 : vector<128x128xf32> to vector<128x128xbf16>
    %c0_30 = arith.constant 0 : index
    %c0_31 = arith.constant 0 : index
    %123 = vector.load %arg4[%c0_30, %c0_31] : memref<128x128xbf16, #tpu.memory_space<vmem>>, vector<128x128xbf16>
    %cst_32 = arith.constant dense<0.000000e+00> : vector<128x128xf32>
    %124 = tpu.matmul %122, %123, %cst_32 {dimension_numbers = #tpu.dot_dimension_numbers<[1], [0], [0], [1], [0, 0, 1, 1], [], []>} : vector<128x128xbf16>, vector<128x128xbf16>, vector<128x128xf32> -> vector<128x128xf32>
    %125 = vector.extract_strided_slice %3 {offsets = [4, 0], sizes = [1, 128], strides = [1, 1]} : vector<6x128xf32> to vector<1x128xf32>
    %126 = vector.extract_strided_slice %3 {offsets = [5, 0], sizes = [1, 128], strides = [1, 1]} : vector<6x128xf32> to vector<1x128xf32>
    %cst_33 = arith.constant dense<0.000000e+00> : vector<128xf32>
    %127 = vector.multi_reduction <add>, %124, %cst_33 [1] : vector<128x128xf32> to vector<128xf32>
    %128 = vector.shape_cast %127 : vector<128xf32> to vector<128x1xf32>
    %cst_34 = arith.constant 0.000000e+00 : f32
    %129 = vector.shape_cast %2 : vector<1x128xi1> to vector<1x128xi1>
    %130 = vector.broadcast %129 : vector<1x128xi1> to vector<128x128xi1>
    %131 = vector.broadcast %cst_34 : f32 to vector<128x128xf32>
    %132 = arith.select %130, %124, %131 : vector<128x128xi1>, vector<128x128xf32>
    %cst_35 = arith.constant dense<0.000000e+00> : vector<128xf32>
    %133 = vector.multi_reduction <add>, %132, %cst_35 [1] : vector<128x128xf32> to vector<128xf32>
    %134 = vector.shape_cast %133 : vector<128xf32> to vector<128x1xf32>
    %135 = arith.subf %128, %134 : vector<128x1xf32>
    %136 = vector.shape_cast %2 : vector<1x128xi1> to vector<1x128xi1>
    %137 = vector.broadcast %136 : vector<1x128xi1> to vector<128x128xi1>
    %138 = vector.shape_cast %134 : vector<128x1xf32> to vector<128x1xf32>
    %139 = vector.broadcast %138 : vector<128x1xf32> to vector<128x128xf32>
    %140 = vector.shape_cast %135 : vector<128x1xf32> to vector<128x1xf32>
    %141 = vector.broadcast %140 : vector<128x1xf32> to vector<128x128xf32>
    %142 = arith.select %137, %139, %141 : vector<128x128xi1>, vector<128x128xf32>
    %cst_36 = arith.constant 1.562500e-02 : f32
    %143 = vector.broadcast %cst_36 : f32 to vector<128x128xf32>
    %144 = arith.mulf %142, %143 : vector<128x128xf32>
    %145 = arith.mulf %124, %124 : vector<128x128xf32>
    %cst_37 = arith.constant dense<0.000000e+00> : vector<128xf32>
    %146 = vector.multi_reduction <add>, %145, %cst_37 [1] : vector<128x128xf32> to vector<128xf32>
    %147 = vector.shape_cast %146 : vector<128xf32> to vector<128x1xf32>
    %cst_38 = arith.constant 0.000000e+00 : f32
    %148 = vector.shape_cast %2 : vector<1x128xi1> to vector<1x128xi1>
    %149 = vector.broadcast %148 : vector<1x128xi1> to vector<128x128xi1>
    %150 = vector.broadcast %cst_38 : f32 to vector<128x128xf32>
    %151 = arith.select %149, %145, %150 : vector<128x128xi1>, vector<128x128xf32>
    %cst_39 = arith.constant dense<0.000000e+00> : vector<128xf32>
    %152 = vector.multi_reduction <add>, %151, %cst_39 [1] : vector<128x128xf32> to vector<128xf32>
    %153 = vector.shape_cast %152 : vector<128xf32> to vector<128x1xf32>
    %154 = arith.subf %147, %153 : vector<128x1xf32>
    %155 = vector.shape_cast %2 : vector<1x128xi1> to vector<1x128xi1>
    %156 = vector.broadcast %155 : vector<1x128xi1> to vector<128x128xi1>
    %157 = vector.shape_cast %153 : vector<128x1xf32> to vector<128x1xf32>
    %158 = vector.broadcast %157 : vector<128x1xf32> to vector<128x128xf32>
    %159 = vector.shape_cast %154 : vector<128x1xf32> to vector<128x1xf32>
    %160 = vector.broadcast %159 : vector<128x1xf32> to vector<128x128xf32>
    %161 = arith.select %156, %158, %160 : vector<128x128xi1>, vector<128x128xf32>
    %cst_40 = arith.constant 1.562500e-02 : f32
    %162 = vector.broadcast %cst_40 : f32 to vector<128x128xf32>
    %163 = arith.mulf %161, %162 : vector<128x128xf32>
    %164 = arith.mulf %144, %144 : vector<128x128xf32>
    %165 = arith.subf %163, %164 : vector<128x128xf32>
    %166 = arith.subf %124, %144 : vector<128x128xf32>
    %cst_41 = arith.constant 9.99999974E-6 : f32
    %167 = vector.broadcast %cst_41 : f32 to vector<128x128xf32>
    %168 = arith.addf %165, %167 : vector<128x128xf32>
    %169 = math.rsqrt %168 : vector<128x128xf32>
    %170 = arith.mulf %166, %169 : vector<128x128xf32>
    %171 = vector.broadcast %125 : vector<1x128xf32> to vector<128x128xf32>
    %172 = arith.mulf %170, %171 : vector<128x128xf32>
    %173 = vector.broadcast %126 : vector<1x128xf32> to vector<128x128xf32>
    %174 = arith.addf %172, %173 : vector<128x128xf32>
    %175 = arith.addf %174, %8 : vector<128x128xf32>
    %cst_42 = arith.constant 0.000000e+00 : f32
    %176 = vector.broadcast %cst_42 : f32 to vector<128x128xf32>
    %177 = arith.cmpf oge, %175, %176 : vector<128x128xf32>
    %cst_43 = arith.constant 2.000000e-01 : f32
    %178 = vector.broadcast %cst_43 : f32 to vector<128x128xf32>
    %179 = arith.mulf %178, %175 : vector<128x128xf32>
    %180 = arith.select %177, %175, %179 : vector<128x128xi1>, vector<128x128xf32>
    %c0_44 = arith.constant 0 : index
    %c0_45 = arith.constant 0 : index
    %181 = vector.load %arg6[%c0_44, %c0_45] : memref<128x128xf32, #tpu.memory_space<vmem>>, vector<128x128xf32>
    tpu.vector_store %arg6[%c0_44, %c0_45], %180 {strides = array<i32>} : memref<128x128xf32, #tpu.memory_space<vmem>>, vector<128x128xf32>,
    return
  }
  func.func @transform_0(%arg0: i32) -> (i32, i32) {
    %c0_i32 = arith.constant 0 : i32
    %c0_i32_0 = arith.constant 0 : i32
    return %arg0, %c0_i32 : i32, i32
  }
  func.func @transform_1(%arg0: i32) -> (i32, i32) {
    %c0_i32 = arith.constant 0 : i32
    %c0_i32_0 = arith.constant 0 : i32
    %c0_i32_1 = arith.constant 0 : i32
    return %c0_i32, %c0_i32_0 : i32, i32
  }
  func.func @transform_2(%arg0: i32) -> (i32, i32) {
    %c0_i32 = arith.constant 0 : i32
    %c0_i32_0 = arith.constant 0 : i32
    %c0_i32_1 = arith.constant 0 : i32
    return %c0_i32, %c0_i32_0 : i32, i32
  }
  func.func @transform_3(%arg0: i32) -> (i32, i32) {
    %c0_i32 = arith.constant 0 : i32
    %c0_i32_0 = arith.constant 0 : i32
    %c0_i32_1 = arith.constant 0 : i32
    return %c0_i32, %c0_i32_0 : i32, i32
  }
  func.func @transform_4(%arg0: i32) -> (i32, i32) {
    %c0_i32 = arith.constant 0 : i32
    %c0_i32_0 = arith.constant 0 : i32
    %c0_i32_1 = arith.constant 0 : i32
    return %c0_i32, %c0_i32_0 : i32, i32
  }
  func.func @transform_5(%arg0: i32) -> (i32, i32) {
    %c0_i32 = arith.constant 0 : i32
    %c0_i32_0 = arith.constant 0 : i32
    return %arg0, %c0_i32 : i32, i32
  }
}

</mosaic_0001>

<llo_original>
// kernel: fcres_block.1
$region0: #{fcres_block.1}
  #allocation0 [shape = 'u32[]', space=smem, size = 0x4, offset = 0x4, fixed_abs, tag = 'smem constant byte address 0x4 - core index']
  #allocation1 [shape = 'u32[144,128]{1,0:T(1,128)}', space=vmem, size = 0x12000, scoped, tag = 'internal scratch']
  %s0 = inlined_call_operand.vmem [shape: bf16[256,64], index: 0, kind: input, shape index: {}]
  %s1 = inlined_call_operand.vmem [shape: bf16[64,256], index: 1, kind: input, shape index: {}]
  %s2 = inlined_call_operand.vmem [shape: bf16[128,128], index: 2, kind: input, shape index: {}]
  %s3 = inlined_call_operand.vmem [shape: bf16[128,128], index: 3, kind: input, shape index: {}]
  %s4 = inlined_call_operand.vmem [shape: f32[6,128], index: 4, kind: input, shape index: {}]
  %s5 = inlined_call_operand.vmem [shape: f32[256,128], index: 5, kind: output, shape index: {}]
  %s6 = sld [smem:[#allocation0]]
  $region53: #{fcres_block.1} parent=0
    _
  %s8 = ssub.s32 1, %s6
  %s9 = scalar_select 0, %s8, %s6
  loop: start=0, step=1, limit=4
  $region2: #{fcres_block.1} parent=0 // loop_pre_header
    _
  $region3: #{fcres_block.1} parent=0 // loop_header
    %s11 = sphi 0, %s15
    %p12 = scmp.ge.s32.totalorder %s11, 4
    %s21 = sphi 0, %s23
    %s24 = sphi 0, %s21
    %s25 = sphi 0, %s24
    %s41 = sphi 0, %s25
    %s45 = sphi 0, %s45
    %s47 = sphi 0, %s45
    %s48 = sphi 0, %s47
    %s62 = sphi 0, %s48
    %s66 = sphi 0, %s66
    %s68 = sphi 0, %s66
    %s69 = sphi 0, %s68
    %s83 = sphi 0, %s69
    %s87 = sphi 0, %s87
    %s89 = sphi 0, %s87
    %s90 = sphi 0, %s89
    %s104 = sphi 0, %s90
    %s108 = sphi 0, %s108
    %s110 = sphi 0, %s108
    %s111 = sphi 0, %s110
    %s125 = sphi 0, %s111
    %s131 = sphi 0, %s133
    %s134 = sphi 0, %s131
    %s135 = sphi 0, %s134
    %s151 = sphi 0, %s135
  $region4: #{fcres_block.1} parent=0 // loop_header_branch
    %14 = sbr.rel (%p12) target = $region8
  $region5: #{fcres_block.1} parent=0 // loop_body
    %s16 = ssub.s32 %s11, 1
    %s17 = ssub.s32 %s11, 2
    %s18 = sadd.s32 %s11, 1
    %s19 = ssub.s32 %s11, %s18
    %p20 = scmp.eq.s32.totalorder %s19, 0
    %s22 = sadd.s32 %s21, 1
    %s23 = scalar_select %p20, %s21, %s22
    %p26 = pneg %p20
    %p27 = scmp.eq.s32.totalorder %s11, 1
    %p28 = por %p26, %p27
    %p29 = scmp.ne.s32.totalorder %s21, %s24
    %p30 = scmp.eq.s32.totalorder %s11, 0
    %p31 = por %p29, %p30
    %p32 = scmp.ne.s32.totalorder %s21, %s24
    %p33 = scmp.eq.s32.totalorder %s16, 1
    %p34 = por %p32, %p33
    %p35 = scmp.ne.s32.totalorder %s24, %s25
    %p36 = scmp.eq.s32.totalorder %s16, 0
    %p37 = por %p35, %p36
    %p38 = scmp.ne.s32.totalorder %s24, %s25
    %p39 = scmp.eq.s32.totalorder %s17, 1
    %p40 = por %p38, %p39
    %p42 = scmp.ne.s32.totalorder %s25, %s41
    %p43 = scmp.eq.s32.totalorder %s17, 0
    %p44 = por %p42, %p43
    %s46 = sadd.s32 %s45, 1
    %p49 = scmp.eq.s32.totalorder %s11, 1
    %p50 = scmp.ne.s32.totalorder %s45, %s47
    %p51 = scmp.eq.s32.totalorder %s11, 0
    %p52 = por %p50, %p51
    %p53 = scmp.ne.s32.totalorder %s45, %s47
    %p54 = scmp.eq.s32.totalorder %s16, 1
    %p55 = por %p53, %p54
    %p56 = scmp.ne.s32.totalorder %s47, %s48
    %p57 = scmp.eq.s32.totalorder %s16, 0
    %p58 = por %p56, %p57
    %p59 = scmp.ne.s32.totalorder %s47, %s48
    %p60 = scmp.eq.s32.totalorder %s17, 1
    %p61 = por %p59, %p60
    %p63 = scmp.ne.s32.totalorder %s48, %s62
    %p64 = scmp.eq.s32.totalorder %s17, 0
    %p65 = por %p63, %p64
    %s67 = sadd.s32 %s66, 1
    %p70 = scmp.eq.s32.totalorder %s11, 1
    %p71 = scmp.ne.s32.totalorder %s66, %s68
    %p72 = scmp.eq.s32.totalorder %s11, 0
    %p73 = por %p71, %p72
    %p74 = scmp.ne.s32.totalorder %s66, %s68
    %p75 = scmp.eq.s32.totalorder %s16, 1
    %p76 = por %p74, %p75
    %p77 = scmp.ne.s32.totalorder %s68, %s69
    %p78 = scmp.eq.s32.totalorder %s16, 0
    %p79 = por %p77, %p78
    %p80 = scmp.ne.s32.totalorder %s68, %s69
    %p81 = scmp.eq.s32.totalorder %s17, 1
    %p82 = por %p80, %p81
    %p84 = scmp.ne.s32.totalorder %s69, %s83
    %p85 = scmp.eq.s32.totalorder %s17, 0
    %p86 = por %p84, %p85
    %s88 = sadd.s32 %s87, 1
    %p91 = scmp.eq.s32.totalorder %s11, 1
    %p92 = scmp.ne.s32.totalorder %s87, %s89
    %p93 = scmp.eq.s32.totalorder %s11, 0
    %p94 = por %p92, %p93
    %p95 = scmp.ne.s32.totalorder %s87, %s89
    %p96 = scmp.eq.s32.totalorder %s16, 1
    %p97 = por %p95, %p96
    %p98 = scmp.ne.s32.totalorder %s89, %s90
    %p99 = scmp.eq.s32.totalorder %s16, 0
    %p100 = por %p98, %p99
    %p101 = scmp.ne.s32.totalorder %s89, %s90
    %p102 = scmp.eq.s32.totalorder %s17, 1
    %p103 = por %p101, %p102
    %p105 = scmp.ne.s32.totalorder %s90, %s104
    %p106 = scmp.eq.s32.totalorder %s17, 0
    %p107 = por %p105, %p106
    %s109 = sadd.s32 %s108, 1
    %p112 = scmp.eq.s32.totalorder %s11, 1
    %p113 = scmp.ne.s32.totalorder %s108, %s110
    %p114 = scmp.eq.s32.totalorder %s11, 0
    %p115 = por %p113, %p114
    %p116 = scmp.ne.s32.totalorder %s108, %s110
    %p117 = scmp.eq.s32.totalorder %s16, 1
    %p118 = por %p116, %p117
    %p119 = scmp.ne.s32.totalorder %s110, %s111
    %p120 = scmp.eq.s32.totalorder %s16, 0
    %p121 = por %p119, %p120
    %p122 = scmp.ne.s32.totalorder %s110, %s111
    %p123 = scmp.eq.s32.totalorder %s17, 1
    %p124 = por %p122, %p123
    %p126 = scmp.ne.s32.totalorder %s111, %s125
    %p127 = scmp.eq.s32.totalorder %s17, 0
    %p128 = por %p126, %p127
    %s129 = ssub.s32 %s11, %s18
    %p130 = scmp.eq.s32.totalorder %s129, 0
    %s132 = sadd.s32 %s131, 1
    %s133 = scalar_select %p130, %s131, %s132
    %p136 = pneg %p130
    %p137 = scmp.eq.s32.totalorder %s11, 1
    %p138 = por %p136, %p137
    %p139 = scmp.ne.s32.totalorder %s131, %s134
    %p140 = scmp.eq.s32.totalorder %s11, 0
    %p141 = por %p139, %p140
    %p142 = scmp.ne.s32.totalorder %s131, %s134
    %p143 = scmp.eq.s32.totalorder %s16, 1
    %p144 = por %p142, %p143
    %p145 = scmp.ne.s32.totalorder %s134, %s135
    %p146 = scmp.eq.s32.totalorder %s16, 0
    %p147 = por %p145, %p146
    %p148 = scmp.ne.s32.totalorder %s134, %s135
    %p149 = scmp.eq.s32.totalorder %s17, 1
    %p150 = por %p148, %p149
    %p152 = scmp.ne.s32.totalorder %s135, %s151
    %p153 = scmp.eq.s32.totalorder %s17, 0
    %p154 = por %p152, %p153
    %p155 = scmp.le.s32.totalorder 1, %s11
    %p156 = scmp.lt.s32.totalorder %s11, 3
    %p157 = pnand %p155, %p156
    %p158 = pneg %p157
    // Predicated region
    $region9: #{fcres_block.1} parent=5 // pred_check
      _
    $region10: #{fcres_block.1} parent=5 // pred_check_branch
      %160 = sbr.rel (%p157) target = $region12
    $region11: #{fcres_block.1} parent=5 // pred_region
      %s161 = ssub.s32 %s11, 1
      // Predicated region
      $region13: #{fcres_block.1} parent=11 // pred_check
        %p162 = pneg %p58
      $region14: #{fcres_block.1} parent=11 // pred_check_branch
        %164 = sbr.rel (%p162) target = $region16
      $region15: #{fcres_block.1} parent=11 // pred_region
        _
      $region16: #{fcres_block.1} parent=11 // pred_fallthru
        _
      // Predicated region
      $region17: #{fcres_block.1} parent=11 // pred_check
        %p165 = pneg %p79
      $region18: #{fcres_block.1} parent=11 // pred_check_branch
        %167 = sbr.rel (%p165) target = $region20
      $region19: #{fcres_block.1} parent=11 // pred_region
        _
      $region20: #{fcres_block.1} parent=11 // pred_fallthru
        _
      // Predicated region
      $region21: #{fcres_block.1} parent=11 // pred_check
        %p168 = pneg %p100
      $region22: #{fcres_block.1} parent=11 // pred_check_branch
        %170 = sbr.rel (%p168) target = $region24
      $region23: #{fcres_block.1} parent=11 // pred_region
        _
      $region24: #{fcres_block.1} parent=11 // pred_fallthru
        _
      // Predicated region
      $region25: #{fcres_block.1} parent=11 // pred_check
        %p171 = pneg %p121
      $region26: #{fcres_block.1} parent=11 // pred_check_branch
        %173 = sbr.rel (%p171) target = $region28
      $region27: #{fcres_block.1} parent=11 // pred_region
        _
      $region28: #{fcres_block.1} parent=11 // pred_fallthru
        _
    $region12: #{fcres_block.1} parent=5 // pred_fallthru
      _
    %p174 = scmp.lt.s32.totalorder %s11, 2
    // Predicated region
    $region29: #{fcres_block.1} parent=5 // pred_check
      %p175 = pneg %p174
    $region30: #{fcres_block.1} parent=5 // pred_check_branch
      %177 = sbr.rel (%p175) target = $region32
    $region31: #{fcres_block.1} parent=5 // pred_region
      // Predicated region
      $region33: #{fcres_block.1} parent=31 // pred_check
        %p178 = pneg %p31
      $region34: #{fcres_block.1} parent=31 // pred_check_branch
        %180 = sbr.rel (%p178) target = $region36
      $region35: #{fcres_block.1} parent=31 // pred_region
        %s181 = smul.u32 16, %s11
        %p182 = scmp.lt.s32.totalorder %s181, 31
        %s183 = scalar_select %p182, %s181, 31
        %s184 = smul.addr %s183, 4
        %s185 = scalar_lea.vmem %s0, %s184
        %s186 = smul.u32 16, %s11
      $region36: #{fcres_block.1} parent=31 // pred_fallthru
        _
    $region32: #{fcres_block.1} parent=5 // pred_fallthru
      _
    %p187 = scmp.le.s32.totalorder 1, %s11
    %p188 = scmp.lt.s32.totalorder %s11, 3
    %p189 = pnand %p187, %p188
    %p190 = pneg %p189
    // Predicated region
    $region37: #{fcres_block.1} parent=5 // pred_check
      _
    $region38: #{fcres_block.1} parent=5 // pred_check_branch
      %192 = sbr.rel (%p189) target = $region40
    $region39: #{fcres_block.1} parent=5 // pred_region
      %s193 = ssub.s32 %s11, 1
      %s194 = smul.u32 16, %s16
      %p195 = scmp.lt.s32.totalorder %s194, 31
      %s196 = scalar_select %p195, %s194, 31
      %s197 = smul.addr %s196, 4
      %s198 = scalar_lea.vmem %s0, %s197
      %p199 = pneg %p37
      %p200 = pneg %p34
      %p201 = pneg %p58
      %p202 = pneg %p55
      %p203 = pneg %p79
      %p204 = pneg %p76
      %p205 = pneg %p100
      %p206 = pneg %p97
      %p207 = pneg %p121
      %p208 = pneg %p118
      %p209 = pneg %p147
      %p210 = pneg %p144
      %s211 = smul.u32 16, %s16
      %p212 = scmp.lt.s32.totalorder %s211, 31
      %s213 = scalar_select %p212, %s211, 31
      %s214 = smul.addr %s213, 8
      %s215 = scalar_lea.vmem %s5, %s214
      %s216 = smul.u32 16, %s16
      %p217 = scmp.lt.s32.totalorder %s216, 31
      %s218 = scalar_select %p217, %s216, 31
      %s219 = smul.addr %s218, 4
      %s220 = scalar_lea.vmem %s0, %s219
      %s221 = smul.u32 16, %s16
      %s222 = smul.u32 16, %s16
      %p223 = scmp.lt.s32.totalorder %s222, 31
      %s224 = scalar_select %p223, %s222, 31
      %s225 = smul.addr %s224, 8
      %s226 = scalar_lea.vmem %s5, %s225
      %s227 = smul.u32 16, %s16
      %v229 = vlaneseq
      %v230 = vand.u32 %v229, 127
      %vm231 = vcmp.lt.s32.totalorder %v230, 64
      %v232 = vld [vmem:[%s4] sm:$0x3f]
      %v233 = vld [vmem:[%s220] sm:$0xf]
      %v234 = vld [vmem:[%s220 + $0x4] sm:$0xf]
      %v235 = vld [vmem:[%s220 + $0x8] sm:$0xf]
      %v236 = vld [vmem:[%s220 + $0xc] sm:$0xf]
      %v237 = vld [vmem:[%s220 + $0x10] sm:$0xf]
      %v238 = vld [vmem:[%s220 + $0x14] sm:$0xf]
      %v239 = vld [vmem:[%s220 + $0x18] sm:$0xf]
      %v240 = vld [vmem:[%s220 + $0x1c] sm:$0xf]
      %v241 = vld [vmem:[%s220 + $0x20] sm:$0xf]
      %v242 = vld [vmem:[%s220 + $0x24] sm:$0xf]
      %v243 = vld [vmem:[%s220 + $0x28] sm:$0xf]
      %v244 = vld [vmem:[%s220 + $0x2c] sm:$0xf]
      %v245 = vld [vmem:[%s220 + $0x30] sm:$0xf]
      %v246 = vld [vmem:[%s220 + $0x34] sm:$0xf]
      %v247 = vld [vmem:[%s220 + $0x38] sm:$0xf]
      %v248 = vld [vmem:[%s220 + $0x3c] sm:$0xf]
      %v249 = vld [vmem:[%s1] sm:$0xff]
      %v250 = vld [vmem:[%s1 + $0x8] sm:$0xff]
      %v251 = vld [vmem:[%s1 + $0x10] sm:$0xff]
      %v252 = vld [vmem:[%s1 + $0x18] sm:$0xff]
      %v253 = vld [vmem:[%s1 + $0x20] sm:$0xff]
      %v254 = vld [vmem:[%s1 + $0x28] sm:$0xff]
      %v255 = vld [vmem:[%s1 + $0x30] sm:$0xff]
      %v256 = vld [vmem:[%s1 + $0x38] sm:$0xff]
      %v273 = vunpack.c.l.b16 %v233
      %v274 = vunpack.c.l.b16 %v234
      %v275 = vunpack.c.l.b16 %v235
      %v276 = vunpack.c.l.b16 %v236
      %v277 = vunpack.c.l.b16 %v237
      %v278 = vunpack.c.l.b16 %v238
      %v279 = vunpack.c.l.b16 %v239
      %v280 = vunpack.c.l.b16 %v240
      %v281 = vunpack.c.l.b16 %v241
      %v282 = vunpack.c.l.b16 %v242
      %v283 = vunpack.c.l.b16 %v243
      %v284 = vunpack.c.l.b16 %v244
      %v285 = vunpack.c.l.b16 %v245
      %v286 = vunpack.c.l.b16 %v246
      %v287 = vunpack.c.l.b16 %v247
      %v288 = vunpack.c.l.b16 %v248
      %v289 = vpack.c.b16 %v274, %v273
      %v290 = vpack.c.b16 %v276, %v275
      %v291 = vpack.c.b16 %v278, %v277
      %v292 = vpack.c.b16 %v280, %v279
      %v293 = vpack.c.b16 %v282, %v281
      %v294 = vpack.c.b16 %v284, %v283
      %v295 = vpack.c.b16 %v286, %v285
      %v296 = vpack.c.b16 %v288, %v287
      %v305 = vunpack.c.l.b16 %v249
      %v306 = vunpack.c.h.b16 %v249
      %v307 = vunpack.c.l.b16 %v250
      %v308 = vunpack.c.h.b16 %v250
      %v309 = vunpack.c.l.b16 %v251
      %v310 = vunpack.c.h.b16 %v251
      %v311 = vunpack.c.l.b16 %v252
      %v312 = vunpack.c.h.b16 %v252
      %v313 = vunpack.c.l.b16 %v253
      %v314 = vunpack.c.h.b16 %v253
      %v315 = vunpack.c.l.b16 %v254
      %v316 = vunpack.c.h.b16 %v254
      %v317 = vunpack.c.l.b16 %v255
      %v318 = vunpack.c.h.b16 %v255
      %v319 = vunpack.c.l.b16 %v256
      %v320 = vunpack.c.h.b16 %v256
      %v321 = vpack.c.b16 %v307, %v305
      %v322 = vpack.c.b16 %v308, %v306
      %v323 = vpack.c.b16 %v311, %v309
      %v324 = vpack.c.b16 %v312, %v310
      %v325 = vpack.c.b16 %v315, %v313
      %v326 = vpack.c.b16 %v316, %v314
      %v327 = vpack.c.b16 %v319, %v317
      %v328 = vpack.c.b16 %v320, %v318
      %vm337 = vcmask 523264
      %v339 = vsel %vm337, %v289, 0
      %v342 = vsel %vm337, %v290, 0
      %v345 = vsel %vm337, %v291, 0
      %v348 = vsel %vm337, %v292, 0
      %v351 = vsel %vm337, %v293, 0
      %v354 = vsel %vm337, %v294, 0
      %v357 = vsel %vm337, %v295, 0
      %v360 = vsel %vm337, %v296, 0
      %362 = vmatprep.subr.bf16.mxu0 0
      %363 = vmatpush1.bf16.msra.mxu0 0
      %364 = vmatprep.subr.bf16.mxu0 0
      %365 = vmatpush1.bf16.msra.mxu0 0
      %366 = vmatprep.subr.bf16.mxu0 0
      %367 = vmatpush1.bf16.msra.mxu0 0
      %368 = vmatprep.subr.bf16.mxu0 0
      %369 = vmatpush1.bf16.msra.mxu0 0
      %370 = vmatprep.subr.bf16.mxu0 %v328
      %371 = vmatpush1.bf16.msra.mxu0 %v327
      %372 = vmatprep.subr.bf16.mxu0 %v326
      %373 = vmatpush1.bf16.msra.mxu0 %v325
      %374 = vmatprep.subr.bf16.mxu0 %v324
      %375 = vmatpush1.bf16.msra.mxu0 %v323
      %376 = vmatprep.subr.bf16.mxu0 %v322
      %377 = vmatpush1.bf16.msra.mxu0 %v321
      %378 = vmatprep.subr.bf16.mxu0 0
      %379 = vmatpush2.bf16.msra.mxu0 0
      %380 = vmatprep.subr.bf16.mxu0 0
      %381 = vmatpush2.bf16.msra.mxu0 0
      %382 = vmatprep.subr.bf16.mxu0 0
      %383 = vmatpush2.bf16.msra.mxu0 0
      %384 = vmatprep.subr.bf16.mxu0 0
      %385 = vmatpush2.bf16.msra.mxu0 0
      %386 = vmatprep.subr.bf16.mxu0 0
      %387 = vmatpush2.bf16.msra.mxu0 0
      %388 = vmatprep.subr.bf16.mxu0 0
      %389 = vmatpush2.bf16.msra.mxu0 0
      %390 = vmatprep.subr.bf16.mxu0 0
      %391 = vmatpush2.bf16.msra.mxu0 0
      %392 = vmatprep.subr.bf16.mxu0 0
      %393 = vmatpush2.bf16.msra.mxu0 0
      %394 = vmatprep.mubr.bf16.mxu0 0
      %395 = vmatmul.mubr.bf16.gmra.mxu0 %v339
      %v396 = vpop.f32.mrf.mxu0
      %v397 = vadd.f32 0.0, %v396
      %v398 = vpop.f32.mrf.mxu0
      %v399 = vadd.f32 0.0, %v398
      %v400 = vpop.f32.mrf.mxu0
      %v401 = vadd.f32 0.0, %v400
      %v402 = vpop.f32.mrf.mxu0
      %v403 = vadd.f32 0.0, %v402
      %404 = vmatprep.mubr.bf16.mxu0 0
      %405 = vmatmul.mubr.bf16.gmra.mxu0 %v342
      %v406 = vpop.f32.mrf.mxu0
      %v407 = vadd.f32 0.0, %v406
      %v408 = vpop.f32.mrf.mxu0
      %v409 = vadd.f32 0.0, %v408
      %v410 = vpop.f32.mrf.mxu0
      %v411 = vadd.f32 0.0, %v410
      %v412 = vpop.f32.mrf.mxu0
      %v413 = vadd.f32 0.0, %v412
      %414 = vmatprep.mubr.bf16.mxu0 0
      %415 = vmatmul.mubr.bf16.gmra.mxu0 %v345
      %v416 = vpop.f32.mrf.mxu0
      %v417 = vadd.f32 0.0, %v416
      %v418 = vpop.f32.mrf.mxu0
      %v419 = vadd.f32 0.0, %v418
      %v420 = vpop.f32.mrf.mxu0
      %v421 = vadd.f32 0.0, %v420
      %v422 = vpop.f32.mrf.mxu0
      %v423 = vadd.f32 0.0, %v422
      %424 = vmatprep.mubr.bf16.mxu0 0
      %425 = vmatmul.mubr.bf16.gmra.mxu0 %v348
      %v426 = vpop.f32.mrf.mxu0
      %v427 = vadd.f32 0.0, %v426
      %v428 = vpop.f32.mrf.mxu0
      %v429 = vadd.f32 0.0, %v428
      %v430 = vpop.f32.mrf.mxu0
      %v431 = vadd.f32 0.0, %v430
      %v432 = vpop.f32.mrf.mxu0
      %v433 = vadd.f32 0.0, %v432
      %434 = vmatprep.mubr.bf16.mxu0 0
      %435 = vmatmul.mubr.bf16.gmra.mxu0 %v351
      %v436 = vpop.f32.mrf.mxu0
      %v437 = vadd.f32 0.0, %v436
      %v438 = vpop.f32.mrf.mxu0
      %v439 = vadd.f32 0.0, %v438
      %v440 = vpop.f32.mrf.mxu0
      %v441 = vadd.f32 0.0, %v440
      %v442 = vpop.f32.mrf.mxu0
      %v443 = vadd.f32 0.0, %v442
      %444 = vmatprep.mubr.bf16.mxu0 0
      %445 = vmatmul.mubr.bf16.gmra.mxu0 %v354
      %v446 = vpop.f32.mrf.mxu0
      %v447 = vadd.f32 0.0, %v446
      %v448 = vpop.f32.mrf.mxu0
      %v449 = vadd.f32 0.0, %v448
      %v450 = vpop.f32.mrf.mxu0
      %v451 = vadd.f32 0.0, %v450
      %v452 = vpop.f32.mrf.mxu0
      %v453 = vadd.f32 0.0, %v452
      %454 = vmatprep.mubr.bf16.mxu0 0
      %455 = vmatmul.mubr.bf16.gmra.mxu0 %v357
      %v456 = vpop.f32.mrf.mxu0
      %v457 = vadd.f32 0.0, %v456
      %v458 = vpop.f32.mrf.mxu0
      %v459 = vadd.f32 0.0, %v458
      %v460 = vpop.f32.mrf.mxu0
      %v461 = vadd.f32 0.0, %v460
      %v462 = vpop.f32.mrf.mxu0
      %v463 = vadd.f32 0.0, %v462
      %464 = vmatprep.mubr.bf16.mxu0 0
      %465 = vmatmul.mubr.bf16.gmra.mxu0 %v360
      %v466 = vpop.f32.mrf.mxu0
      %v467 = vadd.f32 0.0, %v466
      %v468 = vpop.f32.mrf.mxu0
      %v469 = vadd.f32 0.0, %v468
      %v470 = vpop.f32.mrf.mxu0
      %v471 = vadd.f32 0.0, %v470
      %v472 = vpop.f32.mrf.mxu0
      %v473 = vadd.f32 0.0, %v472
      %474 = vdwg.mxu0
      %475 = vadd.xlane.f32.xlu0 %v397
      %v476 = vpop.xlane.xlu0 %475
      %477 = vadd.xlane.f32.xlu0 %v401
      %v478 = vpop.xlane.xlu0 %477
      %479 = vadd.xlane.f32.xlu0 %v407
      %v480 = vpop.xlane.xlu0 %479
      %481 = vadd.xlane.f32.xlu0 %v411
      %v482 = vpop.xlane.xlu0 %481
      %483 = vadd.xlane.f32.xlu0 %v417
      %v484 = vpop.xlane.xlu0 %483
      %485 = vadd.xlane.f32.xlu0 %v421
      %v486 = vpop.xlane.xlu0 %485
      %487 = vadd.xlane.f32.xlu0 %v427
      %v488 = vpop.xlane.xlu0 %487
      %489 = vadd.xlane.f32.xlu0 %v431
      %v490 = vpop.xlane.xlu0 %489
      %491 = vadd.xlane.f32.xlu0 %v437
      %v492 = vpop.xlane.xlu0 %491
      %493 = vadd.xlane.f32.xlu0 %v441
      %v494 = vpop.xlane.xlu0 %493
      %495 = vadd.xlane.f32.xlu0 %v447
      %v496 = vpop.xlane.xlu0 %495
      %497 = vadd.xlane.f32.xlu0 %v451
      %v498 = vpop.xlane.xlu0 %497
      %499 = vadd.xlane.f32.xlu0 %v457
      %v500 = vpop.xlane.xlu0 %499
      %501 = vadd.xlane.f32.xlu0 %v461
      %v502 = vpop.xlane.xlu0 %501
      %503 = vadd.xlane.f32.xlu0 %v467
      %v504 = vpop.xlane.xlu0 %503
      %505 = vadd.xlane.f32.xlu0 %v471
      %v506 = vpop.xlane.xlu0 %505
      %v507 = vsel %vm231, 1, 0
      %vm508 = vcmp.eq.s32.totalorder %v507, 1
      %v509 = vsel %vm508, %v397, 0.0
      %v510 = vsel %vm508, %v401, 0.0
      %v511 = vsel %vm508, %v407, 0.0
      %v512 = vsel %vm508, %v411, 0.0
      %v513 = vsel %vm508, %v417, 0.0
      %v514 = vsel %vm508, %v421, 0.0
      %v515 = vsel %vm508, %v427, 0.0
      %v516 = vsel %vm508, %v431, 0.0
      %v517 = vsel %vm508, %v437, 0.0
      %v518 = vsel %vm508, %v441, 0.0
      %v519 = vsel %vm508, %v447, 0.0
      %v520 = vsel %vm508, %v451, 0.0
      %v521 = vsel %vm508, %v457, 0.0
      %v522 = vsel %vm508, %v461, 0.0
      %v523 = vsel %vm508, %v467, 0.0
      %v524 = vsel %vm508, %v471, 0.0
      %525 = vadd.xlane.f32.xlu0 %v509
      %v526 = vpop.xlane.xlu0 %525
      %527 = vadd.xlane.f32.xlu0 %v510
      %v528 = vpop.xlane.xlu0 %527
      %529 = vadd.xlane.f32.xlu0 %v511
      %v530 = vpop.xlane.xlu0 %529
      %531 = vadd.xlane.f32.xlu0 %v512
      %v532 = vpop.xlane.xlu0 %531
      %533 = vadd.xlane.f32.xlu0 %v513
      %v534 = vpop.xlane.xlu0 %533
      %535 = vadd.xlane.f32.xlu0 %v514
      %v536 = vpop.xlane.xlu0 %535
      %537 = vadd.xlane.f32.xlu0 %v515
      %v538 = vpop.xlane.xlu0 %537
      %539 = vadd.xlane.f32.xlu0 %v516
      %v540 = vpop.xlane.xlu0 %539
      %541 = vadd.xlane.f32.xlu0 %v517
      %v542 = vpop.xlane.xlu0 %541
      %543 = vadd.xlane.f32.xlu0 %v518
      %v544 = vpop.xlane.xlu0 %543
      %545 = vadd.xlane.f32.xlu0 %v519
      %v546 = vpop.xlane.xlu0 %545
      %547 = vadd.xlane.f32.xlu0 %v520
      %v548 = vpop.xlane.xlu0 %547
      %549 = vadd.xlane.f32.xlu0 %v521
      %v550 = vpop.xlane.xlu0 %549
      %551 = vadd.xlane.f32.xlu0 %v522
      %v552 = vpop.xlane.xlu0 %551
      %553 = vadd.xlane.f32.xlu0 %v523
      %v554 = vpop.xlane.xlu0 %553
      %555 = vadd.xlane.f32.xlu0 %v524
      %v556 = vpop.xlane.xlu0 %555
      %v557 = vsub.f32 %v476, %v526
      %v558 = vsub.f32 %v478, %v528
      %v559 = vsub.f32 %v480, %v530
      %v560 = vsub.f32 %v482, %v532
      %v561 = vsub.f32 %v484, %v534
      %v562 = vsub.f32 %v486, %v536
      %v563 = vsub.f32 %v488, %v538
      %v564 = vsub.f32 %v490, %v540
      %v565 = vsub.f32 %v492, %v542
      %v566 = vsub.f32 %v494, %v544
      %v567 = vsub.f32 %v496, %v546
      %v568 = vsub.f32 %v498, %v548
      %v569 = vsub.f32 %v500, %v550
      %v570 = vsub.f32 %v502, %v552
      %v571 = vsub.f32 %v504, %v554
      %v572 = vsub.f32 %v506, %v556
      %v573 = vsel %vm508, %v526, %v557
      %v574 = vsel %vm508, %v528, %v558
      %v575 = vsel %vm508, %v530, %v559
      %v576 = vsel %vm508, %v532, %v560
      %v577 = vsel %vm508, %v534, %v561
      %v578 = vsel %vm508, %v536, %v562
      %v579 = vsel %vm508, %v538, %v563
      %v580 = vsel %vm508, %v540, %v564
      %v581 = vsel %vm508, %v542, %v565
      %v582 = vsel %vm508, %v544, %v566
      %v583 = vsel %vm508, %v546, %v567
      %v584 = vsel %vm508, %v548, %v568
      %v585 = vsel %vm508, %v550, %v569
      %v586 = vsel %vm508, %v552, %v570
      %v587 = vsel %vm508, %v554, %v571
      %v588 = vsel %vm508, %v556, %v572
      %v589 = vmul.f32 %v573, 0.015625
      %v590 = vmul.f32 %v574, 0.015625
      %v591 = vmul.f32 %v575, 0.015625
      %v592 = vmul.f32 %v576, 0.015625
      %v593 = vmul.f32 %v577, 0.015625
      %v594 = vmul.f32 %v578, 0.015625
      %v595 = vmul.f32 %v579, 0.015625
      %v596 = vmul.f32 %v580, 0.015625
      %v597 = vmul.f32 %v581, 0.015625
      %v598 = vmul.f32 %v582, 0.015625
      %v599 = vmul.f32 %v583, 0.015625
      %v600 = vmul.f32 %v584, 0.015625
      %v601 = vmul.f32 %v585, 0.015625
      %v602 = vmul.f32 %v586, 0.015625
      %v603 = vmul.f32 %v587, 0.015625
      %v604 = vmul.f32 %v588, 0.015625
      %v605 = vmul.f32 %v397, %v397
      %v606 = vmul.f32 %v401, %v401
      %v607 = vmul.f32 %v407, %v407
      %v608 = vmul.f32 %v411, %v411
      %v609 = vmul.f32 %v417, %v417
      %v610 = vmul.f32 %v421, %v421
      %v611 = vmul.f32 %v427, %v427
      %v612 = vmul.f32 %v431, %v431
      %v613 = vmul.f32 %v437, %v437
      %v614 = vmul.f32 %v441, %v441
      %v615 = vmul.f32 %v447, %v447
      %v616 = vmul.f32 %v451, %v451
      %v617 = vmul.f32 %v457, %v457
      %v618 = vmul.f32 %v461, %v461
      %v619 = vmul.f32 %v467, %v467
      %v620 = vmul.f32 %v471, %v471
      %621 = vadd.xlane.f32.xlu0 %v605
      %v622 = vpop.xlane.xlu0 %621
      %623 = vadd.xlane.f32.xlu0 %v606
      %v624 = vpop.xlane.xlu0 %623
      %625 = vadd.xlane.f32.xlu0 %v607
      %v626 = vpop.xlane.xlu0 %625
      %627 = vadd.xlane.f32.xlu0 %v608
      %v628 = vpop.xlane.xlu0 %627
      %629 = vadd.xlane.f32.xlu0 %v609
      %v630 = vpop.xlane.xlu0 %629
      %631 = vadd.xlane.f32.xlu0 %v610
      %v632 = vpop.xlane.xlu0 %631
      %633 = vadd.xlane.f32.xlu0 %v611
      %v634 = vpop.xlane.xlu0 %633
      %635 = vadd.xlane.f32.xlu0 %v612
      %v636 = vpop.xlane.xlu0 %635
      %637 = vadd.xlane.f32.xlu0 %v613
      %v638 = vpop.xlane.xlu0 %637
      %639 = vadd.xlane.f32.xlu0 %v614
      %v640 = vpop.xlane.xlu0 %639
      %641 = vadd.xlane.f32.xlu0 %v615
      %v642 = vpop.xlane.xlu0 %641
      %643 = vadd.xlane.f32.xlu0 %v616
      %v644 = vpop.xlane.xlu0 %643
      %645 = vadd.xlane.f32.xlu0 %v617
      %v646 = vpop.xlane.xlu0 %645
      %647 = vadd.xlane.f32.xlu0 %v618
      %v648 = vpop.xlane.xlu0 %647
      %649 = vadd.xlane.f32.xlu0 %v619
      %v650 = vpop.xlane.xlu0 %649
      %651 = vadd.xlane.f32.xlu0 %v620
      %v652 = vpop.xlane.xlu0 %651
      %v653 = vsel %vm508, %v605, 0.0
      %v654 = vsel %vm508, %v606, 0.0
      %v655 = vsel %vm508, %v607, 0.0
      %v656 = vsel %vm508, %v608, 0.0
      %v657 = vsel %vm508, %v609, 0.0
      %v658 = vsel %vm508, %v610, 0.0
      %v659 = vsel %vm508, %v611, 0.0
      %v660 = vsel %vm508, %v612, 0.0
      %v661 = vsel %vm508, %v613, 0.0
      %v662 = vsel %vm508, %v614, 0.0
      %v663 = vsel %vm508, %v615, 0.0
      %v664 = vsel %vm508, %v616, 0.0
      %v665 = vsel %vm508, %v617, 0.0
      %v666 = vsel %vm508, %v618, 0.0
      %v667 = vsel %vm508, %v619, 0.0
      %v668 = vsel %vm508, %v620, 0.0
      %669 = vadd.xlane.f32.xlu0 %v653
      %v670 = vpop.xlane.xlu0 %669
      %671 = vadd.xlane.f32.xlu0 %v654
      %v672 = vpop.xlane.xlu0 %671
      %673 = vadd.xlane.f32.xlu0 %v655
      %v674 = vpop.xlane.xlu0 %673
      %675 = vadd.xlane.f32.xlu0 %v656
      %v676 = vpop.xlane.xlu0 %675
      %677 = vadd.xlane.f32.xlu0 %v657
      %v678 = vpop.xlane.xlu0 %677
      %679 = vadd.xlane.f32.xlu0 %v658
      %v680 = vpop.xlane.xlu0 %679
      %681 = vadd.xlane.f32.xlu0 %v659
      %v682 = vpop.xlane.xlu0 %681
      %683 = vadd.xlane.f32.xlu0 %v660
      %v684 = vpop.xlane.xlu0 %683
      %685 = vadd.xlane.f32.xlu0 %v661
      %v686 = vpop.xlane.xlu0 %685
      %687 = vadd.xlane.f32.xlu0 %v662
      %v688 = vpop.xlane.xlu0 %687
      %689 = vadd.xlane.f32.xlu0 %v663
      %v690 = vpop.xlane.xlu0 %689
      %691 = vadd.xlane.f32.xlu0 %v664
      %v692 = vpop.xlane.xlu0 %691
      %693 = vadd.xlane.f32.xlu0 %v665
      %v694 = vpop.xlane.xlu0 %693
      %695 = vadd.xlane.f32.xlu0 %v666
      %v696 = vpop.xlane.xlu0 %695
      %697 = vadd.xlane.f32.xlu0 %v667
      %v698 = vpop.xlane.xlu0 %697
      %699 = vadd.xlane.f32.xlu0 %v668
      %v700 = vpop.xlane.xlu0 %699
      %v701 = vsub.f32 %v622, %v670
      %v702 = vsub.f32 %v624, %v672
      %v703 = vsub.f32 %v626, %v674
      %v704 = vsub.f32 %v628, %v676
      %v705 = vsub.f32 %v630, %v678
      %v706 = vsub.f32 %v632, %v680
      %v707 = vsub.f32 %v634, %v682
      %v708 = vsub.f32 %v636, %v684
      %v709 = vsub.f32 %v638, %v686
      %v710 = vsub.f32 %v640, %v688
      %v711 = vsub.f32 %v642, %v690
      %v712 = vsub.f32 %v644, %v692
      %v713 = vsub.f32 %v646, %v694
      %v714 = vsub.f32 %v648, %v696
      %v715 = vsub.f32 %v650, %v698
      %v716 = vsub.f32 %v652, %v700
      %v717 = vsel %vm508, %v670, %v701
      %v718 = vsel %vm508, %v672, %v702
      %v719 = vsel %vm508, %v674, %v703
      %v720 = vsel %vm508, %v676, %v704
      %v721 = vsel %vm508, %v678, %v705
      %v722 = vsel %vm508, %v680, %v706
      %v723 = vsel %vm508, %v682, %v707
      %v724 = vsel %vm508, %v684, %v708
      %v725 = vsel %vm508, %v686, %v709
      %v726 = vsel %vm508, %v688, %v710
      %v727 = vsel %vm508, %v690, %v711
      %v728 = vsel %vm508, %v692, %v712
      %v729 = vsel %vm508, %v694, %v713
      %v730 = vsel %vm508, %v696, %v714
      %v731 = vsel %vm508, %v698, %v715
      %v732 = vsel %vm508, %v700, %v716
      %v733 = vmul.f32 %v717, 0.015625
      %v734 = vmul.f32 %v718, 0.015625
      %v735 = vmul.f32 %v719, 0.015625
      %v736 = vmul.f32 %v720, 0.015625
      %v737 = vmul.f32 %v721, 0.015625
      %v738 = vmul.f32 %v722, 0.015625
      %v739 = vmul.f32 %v723, 0.015625
      %v740 = vmul.f32 %v724, 0.015625
      %v741 = vmul.f32 %v725, 0.015625
      %v742 = vmul.f32 %v726, 0.015625
      %v743 = vmul.f32 %v727, 0.015625
      %v744 = vmul.f32 %v728, 0.015625
      %v745 = vmul.f32 %v729, 0.015625
      %v746 = vmul.f32 %v730, 0.015625
      %v747 = vmul.f32 %v731, 0.015625
      %v748 = vmul.f32 %v732, 0.015625
      %v749 = vmul.f32 %v589, %v589
      %v750 = vmul.f32 %v590, %v590
      %v751 = vmul.f32 %v591, %v591
      %v752 = vmul.f32 %v592, %v592
      %v753 = vmul.f32 %v593, %v593
      %v754 = vmul.f32 %v594, %v594
      %v755 = vmul.f32 %v595, %v595
      %v756 = vmul.f32 %v596, %v596
      %v757 = vmul.f32 %v597, %v597
      %v758 = vmul.f32 %v598, %v598
      %v759 = vmul.f32 %v599, %v599
      %v760 = vmul.f32 %v600, %v600
      %v761 = vmul.f32 %v601, %v601
      %v762 = vmul.f32 %v602, %v602
      %v763 = vmul.f32 %v603, %v603
      %v764 = vmul.f32 %v604, %v604
      %v765 = vsub.f32 %v733, %v749
      %v766 = vsub.f32 %v734, %v750
      %v767 = vsub.f32 %v735, %v751
      %v768 = vsub.f32 %v736, %v752
      %v769 = vsub.f32 %v737, %v753
      %v770 = vsub.f32 %v738, %v754
      %v771 = vsub.f32 %v739, %v755
      %v772 = vsub.f32 %v740, %v756
      %v773 = vsub.f32 %v741, %v757
      %v774 = vsub.f32 %v742, %v758
      %v775 = vsub.f32 %v743, %v759
      %v776 = vsub.f32 %v744, %v760
      %v777 = vsub.f32 %v745, %v761
      %v778 = vsub.f32 %v746, %v762
      %v779 = vsub.f32 %v747, %v763
      %v780 = vsub.f32 %v748, %v764
      %v781 = vsub.f32 %v397, %v589
      %v782 = vsub.f32 %v401, %v590
      %v783 = vsub.f32 %v407, %v591
      %v784 = vsub.f32 %v411, %v592
      %v785 = vsub.f32 %v417, %v593
      %v786 = vsub.f32 %v421, %v594
      %v787 = vsub.f32 %v427, %v595
      %v788 = vsub.f32 %v431, %v596
      %v789 = vsub.f32 %v437, %v597
      %v790 = vsub.f32 %v441, %v598
      %v791 = vsub.f32 %v447, %v599
      %v792 = vsub.f32 %v451, %v600
      %v793 = vsub.f32 %v457, %v601
      %v794 = vsub.f32 %v461, %v602
      %v795 = vsub.f32 %v467, %v603
      %v796 = vsub.f32 %v471, %v604
      %v797 = vadd.f32 %v765, 1e-05
      %v798 = vadd.f32 %v766, 1e-05
      %v799 = vadd.f32 %v767, 1e-05
      %v800 = vadd.f32 %v768, 1e-05
      %v801 = vadd.f32 %v769, 1e-05
      %v802 = vadd.f32 %v770, 1e-05
      %v803 = vadd.f32 %v771, 1e-05
      %v804 = vadd.f32 %v772, 1e-05
      %v805 = vadd.f32 %v773, 1e-05
      %v806 = vadd.f32 %v774, 1e-05
      %v807 = vadd.f32 %v775, 1e-05
      %v808 = vadd.f32 %v776, 1e-05
      %v809 = vadd.f32 %v777, 1e-05
      %v810 = vadd.f32 %v778, 1e-05
      %v811 = vadd.f32 %v779, 1e-05
      %v812 = vadd.f32 %v780, 1e-05
      %v813 = vrsqrt.pop %v797
      %v814 = vrsqrt.pop %v798
      %v815 = vrsqrt.pop %v799
      %v816 = vrsqrt.pop %v800
      %v817 = vrsqrt.pop %v801
      %v818 = vrsqrt.pop %v802
      %v819 = vrsqrt.pop %v803
      %v820 = vrsqrt.pop %v804
      %v821 = vrsqrt.pop %v805
      %v822 = vrsqrt.pop %v806
      %v823 = vrsqrt.pop %v807
      %v824 = vrsqrt.pop %v808
      %v825 = vrsqrt.pop %v809
      %v826 = vrsqrt.pop %v810
      %v827 = vrsqrt.pop %v811
      %v828 = vrsqrt.pop %v812
      %v829 = vmul.f32 %v781, %v813
      %v830 = vmul.f32 %v782, %v814
      %v831 = vmul.f32 %v783, %v815
      %v832 = vmul.f32 %v784, %v816
      %v833 = vmul.f32 %v785, %v817
      %v834 = vmul.f32 %v786, %v818
      %v835 = vmul.f32 %v787, %v819
      %v836 = vmul.f32 %v788, %v820
      %v837 = vmul.f32 %v789, %v821
      %v838 = vmul.f32 %v790, %v822
      %v839 = vmul.f32 %v791, %v823
      %v840 = vmul.f32 %v792, %v824
      %v841 = vmul.f32 %v793, %v825
      %v842 = vmul.f32 %v794, %v826
      %v843 = vmul.f32 %v795, %v827
      %v844 = vmul.f32 %v796, %v828
      %v845 = vlaneseq
      %v846 = vshrl.u32 %v845, 7
      %v847 = vsub.s32 0, %v846
      %v848 = vrot.slane %v232, %v847
      %v849 = vmul.f32 %v829, %v848
      %v850 = vmul.f32 %v830, %v848
      %v851 = vmul.f32 %v831, %v848
      %v852 = vmul.f32 %v832, %v848
      %v853 = vmul.f32 %v833, %v848
      %v854 = vmul.f32 %v834, %v848
      %v855 = vmul.f32 %v835, %v848
      %v856 = vmul.f32 %v836, %v848
      %v857 = vmul.f32 %v837, %v848
      %v858 = vmul.f32 %v838, %v848
      %v859 = vmul.f32 %v839, %v848
      %v860 = vmul.f32 %v840, %v848
      %v861 = vmul.f32 %v841, %v848
      %v862 = vmul.f32 %v842, %v848
      %v863 = vmul.f32 %v843, %v848
      %v864 = vmul.f32 %v844, %v848
      %v865 = vlaneseq
      %v866 = vshrl.u32 %v865, 7
      %v867 = vsub.s32 1, %v866
      %v868 = vrot.slane %v232, %v867
      %v869 = vadd.f32 %v849, %v868
      %v870 = vadd.f32 %v850, %v868
      %v871 = vadd.f32 %v851, %v868
      %v872 = vadd.f32 %v852, %v868
      %v873 = vadd.f32 %v853, %v868
      %v874 = vadd.f32 %v854, %v868
      %v875 = vadd.f32 %v855, %v868
      %v876 = vadd.f32 %v856, %v868
      %v877 = vadd.f32 %v857, %v868
      %v878 = vadd.f32 %v858, %v868
      %v879 = vadd.f32 %v859, %v868
      %v880 = vadd.f32 %v860, %v868
      %v881 = vadd.f32 %v861, %v868
      %v882 = vadd.f32 %v862, %v868
      %v883 = vadd.f32 %v863, %v868
      %v884 = vadd.f32 %v864, %v868
      %vm885 = vcmp.ge.f32.partialorder %v869, 0.0
      %vm886 = vcmp.ge.f32.partialorder %v870, 0.0
      %vm887 = vcmp.ge.f32.partialorder %v871, 0.0
      %vm888 = vcmp.ge.f32.partialorder %v872, 0.0
      %vm889 = vcmp.ge.f32.partialorder %v873, 0.0
      %vm890 = vcmp.ge.f32.partialorder %v874, 0.0
      %vm891 = vcmp.ge.f32.partialorder %v875, 0.0
      %vm892 = vcmp.ge.f32.partialorder %v876, 0.0
      %vm893 = vcmp.ge.f32.partialorder %v877, 0.0
      %vm894 = vcmp.ge.f32.partialorder %v878, 0.0
      %vm895 = vcmp.ge.f32.partialorder %v879, 0.0
      %vm896 = vcmp.ge.f32.partialorder %v880, 0.0
      %vm897 = vcmp.ge.f32.partialorder %v881, 0.0
      %vm898 = vcmp.ge.f32.partialorder %v882, 0.0
      %vm899 = vcmp.ge.f32.partialorder %v883, 0.0
      %vm900 = vcmp.ge.f32.partialorder %v884, 0.0
      %v901 = vmul.f32 %v869, 0.2
      %v902 = vmul.f32 %v870, 0.2
      %v903 = vmul.f32 %v871, 0.2
      %v904 = vmul.f32 %v872, 0.2
      %v905 = vmul.f32 %v873, 0.2
      %v906 = vmul.f32 %v874, 0.2
      %v907 = vmul.f32 %v875, 0.2
      %v908 = vmul.f32 %v876, 0.2
      %v909 = vmul.f32 %v877, 0.2
      %v910 = vmul.f32 %v878, 0.2
      %v911 = vmul.f32 %v879, 0.2
      %v912 = vmul.f32 %v880, 0.2
      %v913 = vmul.f32 %v881, 0.2
      %v914 = vmul.f32 %v882, 0.2
      %v915 = vmul.f32 %v883, 0.2
      %v916 = vmul.f32 %v884, 0.2
      %v917 = vsel %vm885, %v869, %v901
      %v918 = vsel %vm886, %v870, %v902
      %v919 = vsel %vm887, %v871, %v903
      %v920 = vsel %vm888, %v872, %v904
      %v921 = vsel %vm889, %v873, %v905
      %v922 = vsel %vm890, %v874, %v906
      %v923 = vsel %vm891, %v875, %v907
      %v924 = vsel %vm892, %v876, %v908
      %v925 = vsel %vm893, %v877, %v909
      %v926 = vsel %vm894, %v878, %v910
      %v927 = vsel %vm895, %v879, %v911
      %v928 = vsel %vm896, %v880, %v912
      %v929 = vsel %vm897, %v881, %v913
      %v930 = vsel %vm898, %v882, %v914
      %v931 = vsel %vm899, %v883, %v915
      %v932 = vsel %vm900, %v884, %v916
      %v933 = vpack.c.bf16 %v918, %v917
      %v934 = vpack.c.bf16 %v920, %v919
      %v935 = vpack.c.bf16 %v922, %v921
      %v936 = vpack.c.bf16 %v924, %v923
      %v937 = vpack.c.bf16 %v926, %v925
      %v938 = vpack.c.bf16 %v928, %v927
      %v939 = vpack.c.bf16 %v930, %v929
      %v940 = vpack.c.bf16 %v932, %v931
      %v941 = vld [vmem:[%s2] sm:$0xf]
      %v942 = vld [vmem:[%s2 + $0x4] sm:$0xf]
      %v943 = vld [vmem:[%s2 + $0x8] sm:$0xf]
      %v944 = vld [vmem:[%s2 + $0xc] sm:$0xf]
      %v945 = vld [vmem:[%s2 + $0x10] sm:$0xf]
      %v946 = vld [vmem:[%s2 + $0x14] sm:$0xf]
      %v947 = vld [vmem:[%s2 + $0x18] sm:$0xf]
      %v948 = vld [vmem:[%s2 + $0x1c] sm:$0xf]
      %v949 = vld [vmem:[%s2 + $0x20] sm:$0xf]
      %v950 = vld [vmem:[%s2 + $0x24] sm:$0xf]
      %v951 = vld [vmem:[%s2 + $0x28] sm:$0xf]
      %v952 = vld [vmem:[%s2 + $0x2c] sm:$0xf]
      %v953 = vld [vmem:[%s2 + $0x30] sm:$0xf]
      %v954 = vld [vmem:[%s2 + $0x34] sm:$0xf]
      %v955 = vld [vmem:[%s2 + $0x38] sm:$0xf]
      %v956 = vld [vmem:[%s2 + $0x3c] sm:$0xf]
      %v973 = vunpack.c.l.b16 %v941
      %v974 = vunpack.c.l.b16 %v942
      %v975 = vunpack.c.l.b16 %v943
      %v976 = vunpack.c.l.b16 %v944
      %v977 = vunpack.c.l.b16 %v945
      %v978 = vunpack.c.l.b16 %v946
      %v979 = vunpack.c.l.b16 %v947
      %v980 = vunpack.c.l.b16 %v948
      %v981 = vunpack.c.l.b16 %v949
      %v982 = vunpack.c.l.b16 %v950
      %v983 = vunpack.c.l.b16 %v951
      %v984 = vunpack.c.l.b16 %v952
      %v985 = vunpack.c.l.b16 %v953
      %v986 = vunpack.c.l.b16 %v954
      %v987 = vunpack.c.l.b16 %v955
      %v988 = vunpack.c.l.b16 %v956
      %v989 = vpack.c.b16 %v974, %v973
      %v990 = vpack.c.b16 %v976, %v975
      %v991 = vpack.c.b16 %v978, %v977
      %v992 = vpack.c.b16 %v980, %v979
      %v993 = vpack.c.b16 %v982, %v981
      %v994 = vpack.c.b16 %v984, %v983
      %v995 = vpack.c.b16 %v986, %v985
      %v996 = vpack.c.b16 %v988, %v987
      %1005 = vmatprep.subr.bf16.mxu0 0
      %1006 = vmatpush1.bf16.msra.mxu0 %v996
      %1007 = vmatprep.subr.bf16.mxu0 0
      %1008 = vmatpush1.bf16.msra.mxu0 %v995
      %1009 = vmatprep.subr.bf16.mxu0 0
      %1010 = vmatpush1.bf16.msra.mxu0 %v994
      %1011 = vmatprep.subr.bf16.mxu0 0
      %1012 = vmatpush1.bf16.msra.mxu0 %v993
      %1013 = vmatprep.subr.bf16.mxu0 0
      %1014 = vmatpush1.bf16.msra.mxu0 %v992
      %1015 = vmatprep.subr.bf16.mxu0 0
      %1016 = vmatpush1.bf16.msra.mxu0 %v991
      %1017 = vmatprep.subr.bf16.mxu0 0
      %1018 = vmatpush1.bf16.msra.mxu0 %v990
      %1019 = vmatprep.subr.bf16.mxu0 0
      %1020 = vmatpush1.bf16.msra.mxu0 %v989
      %1021 = vmatprep.subr.bf16.mxu0 0
      %1022 = vmatpush2.bf16.msra.mxu0 0
      %1023 = vmatprep.subr.bf16.mxu0 0
      %1024 = vmatpush2.bf16.msra.mxu0 0
      %1025 = vmatprep.subr.bf16.mxu0 0
      %1026 = vmatpush2.bf16.msra.mxu0 0
      %1027 = vmatprep.subr.bf16.mxu0 0
      %1028 = vmatpush2.bf16.msra.mxu0 0
      %1029 = vmatprep.subr.bf16.mxu0 0
      %1030 = vmatpush2.bf16.msra.mxu0 0
      %1031 = vmatprep.subr.bf16.mxu0 0
      %1032 = vmatpush2.bf16.msra.mxu0 0
      %1033 = vmatprep.subr.bf16.mxu0 0
      %1034 = vmatpush2.bf16.msra.mxu0 0
      %1035 = vmatprep.subr.bf16.mxu0 0
      %1036 = vmatpush2.bf16.msra.mxu0 0
      %1037 = vmatprep.mubr.bf16.mxu0 0
      %1038 = vmatmul.mubr.bf16.gmra.mxu0 %v933
      %v1039 = vpop.f32.mrf.mxu0
      %v1040 = vadd.f32 0.0, %v1039
      %v1041 = vpop.f32.mrf.mxu0
      %v1042 = vpop.f32.mrf.mxu0
      %v1043 = vadd.f32 0.0, %v1042
      %v1044 = vpop.f32.mrf.mxu0
      %1045 = vmatprep.mubr.bf16.mxu0 0
      %1046 = vmatmul.mubr.bf16.gmra.mxu0 %v934
      %v1047 = vpop.f32.mrf.mxu0
      %v1048 = vadd.f32 0.0, %v1047
      %v1049 = vpop.f32.mrf.mxu0
      %v1050 = vpop.f32.mrf.mxu0
      %v1051 = vadd.f32 0.0, %v1050
      %v1052 = vpop.f32.mrf.mxu0
      %1053 = vmatprep.mubr.bf16.mxu0 0
      %1054 = vmatmul.mubr.bf16.gmra.mxu0 %v935
      %v1055 = vpop.f32.mrf.mxu0
      %v1056 = vadd.f32 0.0, %v1055
      %v1057 = vpop.f32.mrf.mxu0
      %v1058 = vpop.f32.mrf.mxu0
      %v1059 = vadd.f32 0.0, %v1058
      %v1060 = vpop.f32.mrf.mxu0
      %1061 = vmatprep.mubr.bf16.mxu0 0
      %1062 = vmatmul.mubr.bf16.gmra.mxu0 %v936
      %v1063 = vpop.f32.mrf.mxu0
      %v1064 = vadd.f32 0.0, %v1063
      %v1065 = vpop.f32.mrf.mxu0
      %v1066 = vpop.f32.mrf.mxu0
      %v1067 = vadd.f32 0.0, %v1066
      %v1068 = vpop.f32.mrf.mxu0
      %1069 = vmatprep.mubr.bf16.mxu0 0
      %1070 = vmatmul.mubr.bf16.gmra.mxu0 %v937
      %v1071 = vpop.f32.mrf.mxu0
      %v1072 = vadd.f32 0.0, %v1071
      %v1073 = vpop.f32.mrf.mxu0
      %v1074 = vpop.f32.mrf.mxu0
      %v1075 = vadd.f32 0.0, %v1074
      %v1076 = vpop.f32.mrf.mxu0
      %1077 = vmatprep.mubr.bf16.mxu0 0
      %1078 = vmatmul.mubr.bf16.gmra.mxu0 %v938
      %v1079 = vpop.f32.mrf.mxu0
      %v1080 = vadd.f32 0.0, %v1079
      %v1081 = vpop.f32.mrf.mxu0
      %v1082 = vpop.f32.mrf.mxu0
      %v1083 = vadd.f32 0.0, %v1082
      %v1084 = vpop.f32.mrf.mxu0
      %1085 = vmatprep.mubr.bf16.mxu0 0
      %1086 = vmatmul.mubr.bf16.gmra.mxu0 %v939
      %v1087 = vpop.f32.mrf.mxu0
      %v1088 = vadd.f32 0.0, %v1087
      %v1089 = vpop.f32.mrf.mxu0
      %v1090 = vpop.f32.mrf.mxu0
      %v1091 = vadd.f32 0.0, %v1090
      %v1092 = vpop.f32.mrf.mxu0
      %1093 = vmatprep.mubr.bf16.mxu0 0
      %1094 = vmatmul.mubr.bf16.gmra.mxu0 %v940
      %v1095 = vpop.f32.mrf.mxu0
      %v1096 = vadd.f32 0.0, %v1095
      %v1097 = vpop.f32.mrf.mxu0
      %v1098 = vpop.f32.mrf.mxu0
      %v1099 = vadd.f32 0.0, %v1098
      %v1100 = vpop.f32.mrf.mxu0
      %1101 = vdwg.mxu0
      %1102 = vadd.xlane.f32.xlu0 %v1040
      %v1103 = vpop.xlane.xlu0 %1102
      %1104 = vadd.xlane.f32.xlu0 %v1043
      %v1105 = vpop.xlane.xlu0 %1104
      %1106 = vadd.xlane.f32.xlu0 %v1048
      %v1107 = vpop.xlane.xlu0 %1106
      %1108 = vadd.xlane.f32.xlu0 %v1051
      %v1109 = vpop.xlane.xlu0 %1108
      %1110 = vadd.xlane.f32.xlu0 %v1056
      %v1111 = vpop.xlane.xlu0 %1110
      %1112 = vadd.xlane.f32.xlu0 %v1059
      %v1113 = vpop.xlane.xlu0 %1112
      %1114 = vadd.xlane.f32.xlu0 %v1064
      %v1115 = vpop.xlane.xlu0 %1114
      %1116 = vadd.xlane.f32.xlu0 %v1067
      %v1117 = vpop.xlane.xlu0 %1116
      %1118 = vadd.xlane.f32.xlu0 %v1072
      %v1119 = vpop.xlane.xlu0 %1118
      %1120 = vadd.xlane.f32.xlu0 %v1075
      %v1121 = vpop.xlane.xlu0 %1120
      %1122 = vadd.xlane.f32.xlu0 %v1080
      %v1123 = vpop.xlane.xlu0 %1122
      %1124 = vadd.xlane.f32.xlu0 %v1083
      %v1125 = vpop.xlane.xlu0 %1124
      %1126 = vadd.xlane.f32.xlu0 %v1088
      %v1127 = vpop.xlane.xlu0 %1126
      %1128 = vadd.xlane.f32.xlu0 %v1091
      %v1129 = vpop.xlane.xlu0 %1128
      %1130 = vadd.xlane.f32.xlu0 %v1096
      %v1131 = vpop.xlane.xlu0 %1130
      %1132 = vadd.xlane.f32.xlu0 %v1099
      %v1133 = vpop.xlane.xlu0 %1132
      %v1134 = vsel %vm508, %v1040, 0.0
      %v1135 = vsel %vm508, %v1043, 0.0
      %v1136 = vsel %vm508, %v1048, 0.0
      %v1137 = vsel %vm508, %v1051, 0.0
      %v1138 = vsel %vm508, %v1056, 0.0
      %v1139 = vsel %vm508, %v1059, 0.0
      %v1140 = vsel %vm508, %v1064, 0.0
      %v1141 = vsel %vm508, %v1067, 0.0
      %v1142 = vsel %vm508, %v1072, 0.0
      %v1143 = vsel %vm508, %v1075, 0.0
      %v1144 = vsel %vm508, %v1080, 0.0
      %v1145 = vsel %vm508, %v1083, 0.0
      %v1146 = vsel %vm508, %v1088, 0.0
      %v1147 = vsel %vm508, %v1091, 0.0
      %v1148 = vsel %vm508, %v1096, 0.0
      %v1149 = vsel %vm508, %v1099, 0.0
      %1150 = vadd.xlane.f32.xlu0 %v1134
      %v1151 = vpop.xlane.xlu0 %1150
      %1152 = vadd.xlane.f32.xlu0 %v1135
      %v1153 = vpop.xlane.xlu0 %1152
      %1154 = vadd.xlane.f32.xlu0 %v1136
      %v1155 = vpop.xlane.xlu0 %1154
      %1156 = vadd.xlane.f32.xlu0 %v1137
      %v1157 = vpop.xlane.xlu0 %1156
      %1158 = vadd.xlane.f32.xlu0 %v1138
      %v1159 = vpop.xlane.xlu0 %1158
      %1160 = vadd.xlane.f32.xlu0 %v1139
      %v1161 = vpop.xlane.xlu0 %1160
      %1162 = vadd.xlane.f32.xlu0 %v1140
      %v1163 = vpop.xlane.xlu0 %1162
      %1164 = vadd.xlane.f32.xlu0 %v1141
      %v1165 = vpop.xlane.xlu0 %1164
      %1166 = vadd.xlane.f32.xlu0 %v1142
      %v1167 = vpop.xlane.xlu0 %1166
      %1168 = vadd.xlane.f32.xlu0 %v1143
      %v1169 = vpop.xlane.xlu0 %1168
      %1170 = vadd.xlane.f32.xlu0 %v1144
      %v1171 = vpop.xlane.xlu0 %1170
      %1172 = vadd.xlane.f32.xlu0 %v1145
      %v1173 = vpop.xlane.xlu0 %1172
      %1174 = vadd.xlane.f32.xlu0 %v1146
      %v1175 = vpop.xlane.xlu0 %1174
      %1176 = vadd.xlane.f32.xlu0 %v1147
      %v1177 = vpop.xlane.xlu0 %1176
      %1178 = vadd.xlane.f32.xlu0 %v1148
      %v1179 = vpop.xlane.xlu0 %1178
      %1180 = vadd.xlane.f32.xlu0 %v1149
      %v1181 = vpop.xlane.xlu0 %1180
      %v1182 = vsub.f32 %v1103, %v1151
      %v1183 = vsub.f32 %v1105, %v1153
      %v1184 = vsub.f32 %v1107, %v1155
      %v1185 = vsub.f32 %v1109, %v1157
      %v1186 = vsub.f32 %v1111, %v1159
      %v1187 = vsub.f32 %v1113, %v1161
      %v1188 = vsub.f32 %v1115, %v1163
      %v1189 = vsub.f32 %v1117, %v1165
      %v1190 = vsub.f32 %v1119, %v1167
      %v1191 = vsub.f32 %v1121, %v1169
      %v1192 = vsub.f32 %v1123, %v1171
      %v1193 = vsub.f32 %v1125, %v1173
      %v1194 = vsub.f32 %v1127, %v1175
      %v1195 = vsub.f32 %v1129, %v1177
      %v1196 = vsub.f32 %v1131, %v1179
      %v1197 = vsub.f32 %v1133, %v1181
      %v1198 = vsel %vm508, %v1151, %v1182
      %v1199 = vsel %vm508, %v1153, %v1183
      %v1200 = vsel %vm508, %v1155, %v1184
      %v1201 = vsel %vm508, %v1157, %v1185
      %v1202 = vsel %vm508, %v1159, %v1186
      %v1203 = vsel %vm508, %v1161, %v1187
      %v1204 = vsel %vm508, %v1163, %v1188
      %v1205 = vsel %vm508, %v1165, %v1189
      %v1206 = vsel %vm508, %v1167, %v1190
      %v1207 = vsel %vm508, %v1169, %v1191
      %v1208 = vsel %vm508, %v1171, %v1192
      %v1209 = vsel %vm508, %v1173, %v1193
      %v1210 = vsel %vm508, %v1175, %v1194
      %v1211 = vsel %vm508, %v1177, %v1195
      %v1212 = vsel %vm508, %v1179, %v1196
      %v1213 = vsel %vm508, %v1181, %v1197
      %v1214 = vmul.f32 %v1198, 0.015625
      %v1215 = vmul.f32 %v1199, 0.015625
      %v1216 = vmul.f32 %v1200, 0.015625
      %v1217 = vmul.f32 %v1201, 0.015625
      %v1218 = vmul.f32 %v1202, 0.015625
      %v1219 = vmul.f32 %v1203, 0.015625
      %v1220 = vmul.f32 %v1204, 0.015625
      %v1221 = vmul.f32 %v1205, 0.015625
      %v1222 = vmul.f32 %v1206, 0.015625
      %v1223 = vmul.f32 %v1207, 0.015625
      %v1224 = vmul.f32 %v1208, 0.015625
      %v1225 = vmul.f32 %v1209, 0.015625
      %v1226 = vmul.f32 %v1210, 0.015625
      %v1227 = vmul.f32 %v1211, 0.015625
      %v1228 = vmul.f32 %v1212, 0.015625
      %v1229 = vmul.f32 %v1213, 0.015625
      %v1230 = vmul.f32 %v1040, %v1040
      %v1231 = vmul.f32 %v1043, %v1043
      %v1232 = vmul.f32 %v1048, %v1048
      %v1233 = vmul.f32 %v1051, %v1051
      %v1234 = vmul.f32 %v1056, %v1056
      %v1235 = vmul.f32 %v1059, %v1059
      %v1236 = vmul.f32 %v1064, %v1064
      %v1237 = vmul.f32 %v1067, %v1067
      %v1238 = vmul.f32 %v1072, %v1072
      %v1239 = vmul.f32 %v1075, %v1075
      %v1240 = vmul.f32 %v1080, %v1080
      %v1241 = vmul.f32 %v1083, %v1083
      %v1242 = vmul.f32 %v1088, %v1088
      %v1243 = vmul.f32 %v1091, %v1091
      %v1244 = vmul.f32 %v1096, %v1096
      %v1245 = vmul.f32 %v1099, %v1099
      %1246 = vadd.xlane.f32.xlu0 %v1230
      %v1247 = vpop.xlane.xlu0 %1246
      %1248 = vadd.xlane.f32.xlu0 %v1231
      %v1249 = vpop.xlane.xlu0 %1248
      %1250 = vadd.xlane.f32.xlu0 %v1232
      %v1251 = vpop.xlane.xlu0 %1250
      %1252 = vadd.xlane.f32.xlu0 %v1233
      %v1253 = vpop.xlane.xlu0 %1252
      %1254 = vadd.xlane.f32.xlu0 %v1234
      %v1255 = vpop.xlane.xlu0 %1254
      %1256 = vadd.xlane.f32.xlu0 %v1235
      %v1257 = vpop.xlane.xlu0 %1256
      %1258 = vadd.xlane.f32.xlu0 %v1236
      %v1259 = vpop.xlane.xlu0 %1258
      %1260 = vadd.xlane.f32.xlu0 %v1237
      %v1261 = vpop.xlane.xlu0 %1260
      %1262 = vadd.xlane.f32.xlu0 %v1238
      %v1263 = vpop.xlane.xlu0 %1262
      %1264 = vadd.xlane.f32.xlu0 %v1239
      %v1265 = vpop.xlane.xlu0 %1264
      %1266 = vadd.xlane.f32.xlu0 %v1240
      %v1267 = vpop.xlane.xlu0 %1266
      %1268 = vadd.xlane.f32.xlu0 %v1241
      %v1269 = vpop.xlane.xlu0 %1268
      %1270 = vadd.xlane.f32.xlu0 %v1242
      %v1271 = vpop.xlane.xlu0 %1270
      %1272 = vadd.xlane.f32.xlu0 %v1243
      %v1273 = vpop.xlane.xlu0 %1272
      %1274 = vadd.xlane.f32.xlu0 %v1244
      %v1275 = vpop.xlane.xlu0 %1274
      %1276 = vadd.xlane.f32.xlu0 %v1245
      %v1277 = vpop.xlane.xlu0 %1276
      %v1278 = vsel %vm508, %v1230, 0.0
      %v1279 = vsel %vm508, %v1231, 0.0
      %v1280 = vsel %vm508, %v1232, 0.0
      %v1281 = vsel %vm508, %v1233, 0.0
      %v1282 = vsel %vm508, %v1234, 0.0
      %v1283 = vsel %vm508, %v1235, 0.0
      %v1284 = vsel %vm508, %v1236, 0.0
      %v1285 = vsel %vm508, %v1237, 0.0
      %v1286 = vsel %vm508, %v1238, 0.0
      %v1287 = vsel %vm508, %v1239, 0.0
      %v1288 = vsel %vm508, %v1240, 0.0
      %v1289 = vsel %vm508, %v1241, 0.0
      %v1290 = vsel %vm508, %v1242, 0.0
      %v1291 = vsel %vm508, %v1243, 0.0
      %v1292 = vsel %vm508, %v1244, 0.0
      %v1293 = vsel %vm508, %v1245, 0.0
      %1294 = vadd.xlane.f32.xlu0 %v1278
      %v1295 = vpop.xlane.xlu0 %1294
      %1296 = vadd.xlane.f32.xlu0 %v1279
      %v1297 = vpop.xlane.xlu0 %1296
      %1298 = vadd.xlane.f32.xlu0 %v1280
      %v1299 = vpop.xlane.xlu0 %1298
      %1300 = vadd.xlane.f32.xlu0 %v1281
      %v1301 = vpop.xlane.xlu0 %1300
      %1302 = vadd.xlane.f32.xlu0 %v1282
      %v1303 = vpop.xlane.xlu0 %1302
      %1304 = vadd.xlane.f32.xlu0 %v1283
      %v1305 = vpop.xlane.xlu0 %1304
      %1306 = vadd.xlane.f32.xlu0 %v1284
      %v1307 = vpop.xlane.xlu0 %1306
      %1308 = vadd.xlane.f32.xlu0 %v1285
      %v1309 = vpop.xlane.xlu0 %1308
      %1310 = vadd.xlane.f32.xlu0 %v1286
      %v1311 = vpop.xlane.xlu0 %1310
      %1312 = vadd.xlane.f32.xlu0 %v1287
      %v1313 = vpop.xlane.xlu0 %1312
      %1314 = vadd.xlane.f32.xlu0 %v1288
      %v1315 = vpop.xlane.xlu0 %1314
      %1316 = vadd.xlane.f32.xlu0 %v1289
      %v1317 = vpop.xlane.xlu0 %1316
      %1318 = vadd.xlane.f32.xlu0 %v1290
      %v1319 = vpop.xlane.xlu0 %1318
      %1320 = vadd.xlane.f32.xlu0 %v1291
      %v1321 = vpop.xlane.xlu0 %1320
      %1322 = vadd.xlane.f32.xlu0 %v1292
      %v1323 = vpop.xlane.xlu0 %1322
      %1324 = vadd.xlane.f32.xlu0 %v1293
      %v1325 = vpop.xlane.xlu0 %1324
      %v1326 = vsub.f32 %v1247, %v1295
      %v1327 = vsub.f32 %v1249, %v1297
      %v1328 = vsub.f32 %v1251, %v1299
      %v1329 = vsub.f32 %v1253, %v1301
      %v1330 = vsub.f32 %v1255, %v1303
      %v1331 = vsub.f32 %v1257, %v1305
      %v1332 = vsub.f32 %v1259, %v1307
      %v1333 = vsub.f32 %v1261, %v1309
      %v1334 = vsub.f32 %v1263, %v1311
      %v1335 = vsub.f32 %v1265, %v1313
      %v1336 = vsub.f32 %v1267, %v1315
      %v1337 = vsub.f32 %v1269, %v1317
      %v1338 = vsub.f32 %v1271, %v1319
      %v1339 = vsub.f32 %v1273, %v1321
      %v1340 = vsub.f32 %v1275, %v1323
      %v1341 = vsub.f32 %v1277, %v1325
      %v1342 = vsel %vm508, %v1295, %v1326
      %v1343 = vsel %vm508, %v1297, %v1327
      %v1344 = vsel %vm508, %v1299, %v1328
      %v1345 = vsel %vm508, %v1301, %v1329
      %v1346 = vsel %vm508, %v1303, %v1330
      %v1347 = vsel %vm508, %v1305, %v1331
      %v1348 = vsel %vm508, %v1307, %v1332
      %v1349 = vsel %vm508, %v1309, %v1333
      %v1350 = vsel %vm508, %v1311, %v1334
      %v1351 = vsel %vm508, %v1313, %v1335
      %v1352 = vsel %vm508, %v1315, %v1336
      %v1353 = vsel %vm508, %v1317, %v1337
      %v1354 = vsel %vm508, %v1319, %v1338
      %v1355 = vsel %vm508, %v1321, %v1339
      %v1356 = vsel %vm508, %v1323, %v1340
      %v1357 = vsel %vm508, %v1325, %v1341
      %v1358 = vmul.f32 %v1342, 0.015625
      %v1359 = vmul.f32 %v1343, 0.015625
      %v1360 = vmul.f32 %v1344, 0.015625
      %v1361 = vmul.f32 %v1345, 0.015625
      %v1362 = vmul.f32 %v1346, 0.015625
      %v1363 = vmul.f32 %v1347, 0.015625
      %v1364 = vmul.f32 %v1348, 0.015625
      %v1365 = vmul.f32 %v1349, 0.015625
      %v1366 = vmul.f32 %v1350, 0.015625
      %v1367 = vmul.f32 %v1351, 0.015625
      %v1368 = vmul.f32 %v1352, 0.015625
      %v1369 = vmul.f32 %v1353, 0.015625
      %v1370 = vmul.f32 %v1354, 0.015625
      %v1371 = vmul.f32 %v1355, 0.015625
      %v1372 = vmul.f32 %v1356, 0.015625
      %v1373 = vmul.f32 %v1357, 0.015625
      %v1374 = vmul.f32 %v1214, %v1214
      %v1375 = vmul.f32 %v1215, %v1215
      %v1376 = vmul.f32 %v1216, %v1216
      %v1377 = vmul.f32 %v1217, %v1217
      %v1378 = vmul.f32 %v1218, %v1218
      %v1379 = vmul.f32 %v1219, %v1219
      %v1380 = vmul.f32 %v1220, %v1220
      %v1381 = vmul.f32 %v1221, %v1221
      %v1382 = vmul.f32 %v1222, %v1222
      %v1383 = vmul.f32 %v1223, %v1223
      %v1384 = vmul.f32 %v1224, %v1224
      %v1385 = vmul.f32 %v1225, %v1225
      %v1386 = vmul.f32 %v1226, %v1226
      %v1387 = vmul.f32 %v1227, %v1227
      %v1388 = vmul.f32 %v1228, %v1228
      %v1389 = vmul.f32 %v1229, %v1229
      %v1390 = vsub.f32 %v1358, %v1374
      %v1391 = vsub.f32 %v1359, %v1375
      %v1392 = vsub.f32 %v1360, %v1376
      %v1393 = vsub.f32 %v1361, %v1377
      %v1394 = vsub.f32 %v1362, %v1378
      %v1395 = vsub.f32 %v1363, %v1379
      %v1396 = vsub.f32 %v1364, %v1380
      %v1397 = vsub.f32 %v1365, %v1381
      %v1398 = vsub.f32 %v1366, %v1382
      %v1399 = vsub.f32 %v1367, %v1383
      %v1400 = vsub.f32 %v1368, %v1384
      %v1401 = vsub.f32 %v1369, %v1385
      %v1402 = vsub.f32 %v1370, %v1386
      %v1403 = vsub.f32 %v1371, %v1387
      %v1404 = vsub.f32 %v1372, %v1388
      %v1405 = vsub.f32 %v1373, %v1389
      %v1406 = vsub.f32 %v1040, %v1214
      %v1407 = vsub.f32 %v1043, %v1215
      %v1408 = vsub.f32 %v1048, %v1216
      %v1409 = vsub.f32 %v1051, %v1217
      %v1410 = vsub.f32 %v1056, %v1218
      %v1411 = vsub.f32 %v1059, %v1219
      %v1412 = vsub.f32 %v1064, %v1220
      %v1413 = vsub.f32 %v1067, %v1221
      %v1414 = vsub.f32 %v1072, %v1222
      %v1415 = vsub.f32 %v1075, %v1223
      %v1416 = vsub.f32 %v1080, %v1224
      %v1417 = vsub.f32 %v1083, %v1225
      %v1418 = vsub.f32 %v1088, %v1226
      %v1419 = vsub.f32 %v1091, %v1227
      %v1420 = vsub.f32 %v1096, %v1228
      %v1421 = vsub.f32 %v1099, %v1229
      %v1422 = vadd.f32 %v1390, 1e-05
      %v1423 = vadd.f32 %v1391, 1e-05
      %v1424 = vadd.f32 %v1392, 1e-05
      %v1425 = vadd.f32 %v1393, 1e-05
      %v1426 = vadd.f32 %v1394, 1e-05
      %v1427 = vadd.f32 %v1395, 1e-05
      %v1428 = vadd.f32 %v1396, 1e-05
      %v1429 = vadd.f32 %v1397, 1e-05
      %v1430 = vadd.f32 %v1398, 1e-05
      %v1431 = vadd.f32 %v1399, 1e-05
      %v1432 = vadd.f32 %v1400, 1e-05
      %v1433 = vadd.f32 %v1401, 1e-05
      %v1434 = vadd.f32 %v1402, 1e-05
      %v1435 = vadd.f32 %v1403, 1e-05
      %v1436 = vadd.f32 %v1404, 1e-05
      %v1437 = vadd.f32 %v1405, 1e-05
      %v1438 = vrsqrt.pop %v1422
      %v1439 = vrsqrt.pop %v1423
      %v1440 = vrsqrt.pop %v1424
      %v1441 = vrsqrt.pop %v1425
      %v1442 = vrsqrt.pop %v1426
      %v1443 = vrsqrt.pop %v1427
      %v1444 = vrsqrt.pop %v1428
      %v1445 = vrsqrt.pop %v1429
      %v1446 = vrsqrt.pop %v1430
      %v1447 = vrsqrt.pop %v1431
      %v1448 = vrsqrt.pop %v1432
      %v1449 = vrsqrt.pop %v1433
      %v1450 = vrsqrt.pop %v1434
      %v1451 = vrsqrt.pop %v1435
      %v1452 = vrsqrt.pop %v1436
      %v1453 = vrsqrt.pop %v1437
      %v1454 = vmul.f32 %v1406, %v1438
      %v1455 = vmul.f32 %v1407, %v1439
      %v1456 = vmul.f32 %v1408, %v1440
      %v1457 = vmul.f32 %v1409, %v1441
      %v1458 = vmul.f32 %v1410, %v1442
      %v1459 = vmul.f32 %v1411, %v1443
      %v1460 = vmul.f32 %v1412, %v1444
      %v1461 = vmul.f32 %v1413, %v1445
      %v1462 = vmul.f32 %v1414, %v1446
      %v1463 = vmul.f32 %v1415, %v1447
      %v1464 = vmul.f32 %v1416, %v1448
      %v1465 = vmul.f32 %v1417, %v1449
      %v1466 = vmul.f32 %v1418, %v1450
      %v1467 = vmul.f32 %v1419, %v1451
      %v1468 = vmul.f32 %v1420, %v1452
      %v1469 = vmul.f32 %v1421, %v1453
      %v1470 = vlaneseq
      %v1471 = vshrl.u32 %v1470, 7
      %v1472 = vsub.s32 2, %v1471
      %v1473 = vrot.slane %v232, %v1472
      %v1474 = vmul.f32 %v1454, %v1473
      %v1475 = vmul.f32 %v1455, %v1473
      %v1476 = vmul.f32 %v1456, %v1473
      %v1477 = vmul.f32 %v1457, %v1473
      %v1478 = vmul.f32 %v1458, %v1473
      %v1479 = vmul.f32 %v1459, %v1473
      %v1480 = vmul.f32 %v1460, %v1473
      %v1481 = vmul.f32 %v1461, %v1473
      %v1482 = vmul.f32 %v1462, %v1473
      %v1483 = vmul.f32 %v1463, %v1473
      %v1484 = vmul.f32 %v1464, %v1473
      %v1485 = vmul.f32 %v1465, %v1473
      %v1486 = vmul.f32 %v1466, %v1473
      %v1487 = vmul.f32 %v1467, %v1473
      %v1488 = vmul.f32 %v1468, %v1473
      %v1489 = vmul.f32 %v1469, %v1473
      %v1490 = vlaneseq
      %v1491 = vshrl.u32 %v1490, 7
      %v1492 = vsub.s32 3, %v1491
      %v1493 = vrot.slane %v232, %v1492
      %v1494 = vadd.f32 %v1474, %v1493
      %v1495 = vadd.f32 %v1475, %v1493
      %v1496 = vadd.f32 %v1476, %v1493
      %v1497 = vadd.f32 %v1477, %v1493
      %v1498 = vadd.f32 %v1478, %v1493
      %v1499 = vadd.f32 %v1479, %v1493
      %v1500 = vadd.f32 %v1480, %v1493
      %v1501 = vadd.f32 %v1481, %v1493
      %v1502 = vadd.f32 %v1482, %v1493
      %v1503 = vadd.f32 %v1483, %v1493
      %v1504 = vadd.f32 %v1484, %v1493
      %v1505 = vadd.f32 %v1485, %v1493
      %v1506 = vadd.f32 %v1486, %v1493
      %v1507 = vadd.f32 %v1487, %v1493
      %v1508 = vadd.f32 %v1488, %v1493
      %v1509 = vadd.f32 %v1489, %v1493
      %vm1510 = vcmp.ge.f32.partialorder %v1494, 0.0
      %vm1511 = vcmp.ge.f32.partialorder %v1495, 0.0
      %vm1512 = vcmp.ge.f32.partialorder %v1496, 0.0
      %vm1513 = vcmp.ge.f32.partialorder %v1497, 0.0
      %vm1514 = vcmp.ge.f32.partialorder %v1498, 0.0
      %vm1515 = vcmp.ge.f32.partialorder %v1499, 0.0
      %vm1516 = vcmp.ge.f32.partialorder %v1500, 0.0
      %vm1517 = vcmp.ge.f32.partialorder %v1501, 0.0
      %vm1518 = vcmp.ge.f32.partialorder %v1502, 0.0
      %vm1519 = vcmp.ge.f32.partialorder %v1503, 0.0
      %vm1520 = vcmp.ge.f32.partialorder %v1504, 0.0
      %vm1521 = vcmp.ge.f32.partialorder %v1505, 0.0
      %vm1522 = vcmp.ge.f32.partialorder %v1506, 0.0
      %vm1523 = vcmp.ge.f32.partialorder %v1507, 0.0
      %vm1524 = vcmp.ge.f32.partialorder %v1508, 0.0
      %vm1525 = vcmp.ge.f32.partialorder %v1509, 0.0
      %v1526 = vmul.f32 %v1494, 0.2
      %v1527 = vmul.f32 %v1495, 0.2
      %v1528 = vmul.f32 %v1496, 0.2
      %v1529 = vmul.f32 %v1497, 0.2
      %v1530 = vmul.f32 %v1498, 0.2
      %v1531 = vmul.f32 %v1499, 0.2
      %v1532 = vmul.f32 %v1500, 0.2
      %v1533 = vmul.f32 %v1501, 0.2
      %v1534 = vmul.f32 %v1502, 0.2
      %v1535 = vmul.f32 %v1503, 0.2
      %v1536 = vmul.f32 %v1504, 0.2
      %v1537 = vmul.f32 %v1505, 0.2
      %v1538 = vmul.f32 %v1506, 0.2
      %v1539 = vmul.f32 %v1507, 0.2
      %v1540 = vmul.f32 %v1508, 0.2
      %v1541 = vmul.f32 %v1509, 0.2
      %v1542 = vsel %vm1510, %v1494, %v1526
      %v1543 = vsel %vm1511, %v1495, %v1527
      %v1544 = vsel %vm1512, %v1496, %v1528
      %v1545 = vsel %vm1513, %v1497, %v1529
      %v1546 = vsel %vm1514, %v1498, %v1530
      %v1547 = vsel %vm1515, %v1499, %v1531
      %v1548 = vsel %vm1516, %v1500, %v1532
      %v1549 = vsel %vm1517, %v1501, %v1533
      %v1550 = vsel %vm1518, %v1502, %v1534
      %v1551 = vsel %vm1519, %v1503, %v1535
      %v1552 = vsel %vm1520, %v1504, %v1536
      %v1553 = vsel %vm1521, %v1505, %v1537
      %v1554 = vsel %vm1522, %v1506, %v1538
      %v1555 = vsel %vm1523, %v1507, %v1539
      %v1556 = vsel %vm1524, %v1508, %v1540
      %v1557 = vsel %vm1525, %v1509, %v1541
      %v1558 = vpack.c.bf16 %v1543, %v1542
      %v1559 = vpack.c.bf16 %v1545, %v1544
      %v1560 = vpack.c.bf16 %v1547, %v1546
      %v1561 = vpack.c.bf16 %v1549, %v1548
      %v1562 = vpack.c.bf16 %v1551, %v1550
      %v1563 = vpack.c.bf16 %v1553, %v1552
      %v1564 = vpack.c.bf16 %v1555, %v1554
      %v1565 = vpack.c.bf16 %v1557, %v1556
      %v1566 = vld [vmem:[%s3] sm:$0xf]
      %v1567 = vld [vmem:[%s3 + $0x4] sm:$0xf]
      %v1568 = vld [vmem:[%s3 + $0x8] sm:$0xf]
      %v1569 = vld [vmem:[%s3 + $0xc] sm:$0xf]
      %v1570 = vld [vmem:[%s3 + $0x10] sm:$0xf]
      %v1571 = vld [vmem:[%s3 + $0x14] sm:$0xf]
      %v1572 = vld [vmem:[%s3 + $0x18] sm:$0xf]
      %v1573 = vld [vmem:[%s3 + $0x1c] sm:$0xf]
      %v1574 = vld [vmem:[%s3 + $0x20] sm:$0xf]
      %v1575 = vld [vmem:[%s3 + $0x24] sm:$0xf]
      %v1576 = vld [vmem:[%s3 + $0x28] sm:$0xf]
      %v1577 = vld [vmem:[%s3 + $0x2c] sm:$0xf]
      %v1578 = vld [vmem:[%s3 + $0x30] sm:$0xf]
      %v1579 = vld [vmem:[%s3 + $0x34] sm:$0xf]
      %v1580 = vld [vmem:[%s3 + $0x38] sm:$0xf]
      %v1581 = vld [vmem:[%s3 + $0x3c] sm:$0xf]
      %v1598 = vunpack.c.l.b16 %v1566
      %v1599 = vunpack.c.l.b16 %v1567
      %v1600 = vunpack.c.l.b16 %v1568
      %v1601 = vunpack.c.l.b16 %v1569
      %v1602 = vunpack.c.l.b16 %v1570
      %v1603 = vunpack.c.l.b16 %v1571
      %v1604 = vunpack.c.l.b16 %v1572
      %v1605 = vunpack.c.l.b16 %v1573
      %v1606 = vunpack.c.l.b16 %v1574
      %v1607 = vunpack.c.l.b16 %v1575
      %v1608 = vunpack.c.l.b16 %v1576
      %v1609 = vunpack.c.l.b16 %v1577
      %v1610 = vunpack.c.l.b16 %v1578
      %v1611 = vunpack.c.l.b16 %v1579
      %v1612 = vunpack.c.l.b16 %v1580
      %v1613 = vunpack.c.l.b16 %v1581
      %v1614 = vpack.c.b16 %v1599, %v1598
      %v1615 = vpack.c.b16 %v1601, %v1600
      %v1616 = vpack.c.b16 %v1603, %v1602
      %v1617 = vpack.c.b16 %v1605, %v1604
      %v1618 = vpack.c.b16 %v1607, %v1606
      %v1619 = vpack.c.b16 %v1609, %v1608
      %v1620 = vpack.c.b16 %v1611, %v1610
      %v1621 = vpack.c.b16 %v1613, %v1612
      %1630 = vmatprep.subr.bf16.mxu0 0
      %1631 = vmatpush1.bf16.msra.mxu0 %v1621
      %1632 = vmatprep.subr.bf16.mxu0 0
      %1633 = vmatpush1.bf16.msra.mxu0 %v1620
      %1634 = vmatprep.subr.bf16.mxu0 0
      %1635 = vmatpush1.bf16.msra.mxu0 %v1619
      %1636 = vmatprep.subr.bf16.mxu0 0
      %1637 = vmatpush1.bf16.msra.mxu0 %v1618
      %1638 = vmatprep.subr.bf16.mxu0 0
      %1639 = vmatpush1.bf16.msra.mxu0 %v1617
      %1640 = vmatprep.subr.bf16.mxu0 0
      %1641 = vmatpush1.bf16.msra.mxu0 %v1616
      %1642 = vmatprep.subr.bf16.mxu0 0
      %1643 = vmatpush1.bf16.msra.mxu0 %v1615
      %1644 = vmatprep.subr.bf16.mxu0 0
      %1645 = vmatpush1.bf16.msra.mxu0 %v1614
      %1646 = vmatprep.subr.bf16.mxu0 0
      %1647 = vmatpush2.bf16.msra.mxu0 0
      %1648 = vmatprep.subr.bf16.mxu0 0
      %1649 = vmatpush2.bf16.msra.mxu0 0
      %1650 = vmatprep.subr.bf16.mxu0 0
      %1651 = vmatpush2.bf16.msra.mxu0 0
      %1652 = vmatprep.subr.bf16.mxu0 0
      %1653 = vmatpush2.bf16.msra.mxu0 0
      %1654 = vmatprep.subr.bf16.mxu0 0
      %1655 = vmatpush2.bf16.msra.mxu0 0
      %1656 = vmatprep.subr.bf16.mxu0 0
      %1657 = vmatpush2.bf16.msra.mxu0 0
      %1658 = vmatprep.subr.bf16.mxu0 0
      %1659 = vmatpush2.bf16.msra.mxu0 0
      %1660 = vmatprep.subr.bf16.mxu0 0
      %1661 = vmatpush2.bf16.msra.mxu0 0
      %1662 = vmatprep.mubr.bf16.mxu0 0
      %1663 = vmatmul.mubr.bf16.gmra.mxu0 %v1558
      %v1664 = vpop.f32.mrf.mxu0
      %v1665 = vadd.f32 0.0, %v1664
      %v1666 = vpop.f32.mrf.mxu0
      %v1667 = vpop.f32.mrf.mxu0
      %v1668 = vadd.f32 0.0, %v1667
      %v1669 = vpop.f32.mrf.mxu0
      %1670 = vmatprep.mubr.bf16.mxu0 0
      %1671 = vmatmul.mubr.bf16.gmra.mxu0 %v1559
      %v1672 = vpop.f32.mrf.mxu0
      %v1673 = vadd.f32 0.0, %v1672
      %v1674 = vpop.f32.mrf.mxu0
      %v1675 = vpop.f32.mrf.mxu0
      %v1676 = vadd.f32 0.0, %v1675
      %v1677 = vpop.f32.mrf.mxu0
      %1678 = vmatprep.mubr.bf16.mxu0 0
      %1679 = vmatmul.mubr.bf16.gmra.mxu0 %v1560
      %v1680 = vpop.f32.mrf.mxu0
      %v1681 = vadd.f32 0.0, %v1680
      %v1682 = vpop.f32.mrf.mxu0
      %v1683 = vpop.f32.mrf.mxu0
      %v1684 = vadd.f32 0.0, %v1683
      %v1685 = vpop.f32.mrf.mxu0
      %1686 = vmatprep.mubr.bf16.mxu0 0
      %1687 = vmatmul.mubr.bf16.gmra.mxu0 %v1561
      %v1688 = vpop.f32.mrf.mxu0
      %v1689 = vadd.f32 0.0, %v1688
      %v1690 = vpop.f32.mrf.mxu0
      %v1691 = vpop.f32.mrf.mxu0
      %v1692 = vadd.f32 0.0, %v1691
      %v1693 = vpop.f32.mrf.mxu0
      %1694 = vmatprep.mubr.bf16.mxu0 0
      %1695 = vmatmul.mubr.bf16.gmra.mxu0 %v1562
      %v1696 = vpop.f32.mrf.mxu0
      %v1697 = vadd.f32 0.0, %v1696
      %v1698 = vpop.f32.mrf.mxu0
      %v1699 = vpop.f32.mrf.mxu0
      %v1700 = vadd.f32 0.0, %v1699
      %v1701 = vpop.f32.mrf.mxu0
      %1702 = vmatprep.mubr.bf16.mxu0 0
      %1703 = vmatmul.mubr.bf16.gmra.mxu0 %v1563
      %v1704 = vpop.f32.mrf.mxu0
      %v1705 = vadd.f32 0.0, %v1704
      %v1706 = vpop.f32.mrf.mxu0
      %v1707 = vpop.f32.mrf.mxu0
      %v1708 = vadd.f32 0.0, %v1707
      %v1709 = vpop.f32.mrf.mxu0
      %1710 = vmatprep.mubr.bf16.mxu0 0
      %1711 = vmatmul.mubr.bf16.gmra.mxu0 %v1564
      %v1712 = vpop.f32.mrf.mxu0
      %v1713 = vadd.f32 0.0, %v1712
      %v1714 = vpop.f32.mrf.mxu0
      %v1715 = vpop.f32.mrf.mxu0
      %v1716 = vadd.f32 0.0, %v1715
      %v1717 = vpop.f32.mrf.mxu0
      %1718 = vmatprep.mubr.bf16.mxu0 0
      %1719 = vmatmul.mubr.bf16.gmra.mxu0 %v1565
      %v1720 = vpop.f32.mrf.mxu0
      %v1721 = vadd.f32 0.0, %v1720
      %v1722 = vpop.f32.mrf.mxu0
      %v1723 = vpop.f32.mrf.mxu0
      %v1724 = vadd.f32 0.0, %v1723
      %v1725 = vpop.f32.mrf.mxu0
      %1726 = vdwg.mxu0
      %1727 = vadd.xlane.f32.xlu0 %v1665
      %v1728 = vpop.xlane.xlu0 %1727
      %1729 = vadd.xlane.f32.xlu0 %v1668
      %v1730 = vpop.xlane.xlu0 %1729
      %1731 = vadd.xlane.f32.xlu0 %v1673
      %v1732 = vpop.xlane.xlu0 %1731
      %1733 = vadd.xlane.f32.xlu0 %v1676
      %v1734 = vpop.xlane.xlu0 %1733
      %1735 = vadd.xlane.f32.xlu0 %v1681
      %v1736 = vpop.xlane.xlu0 %1735
      %1737 = vadd.xlane.f32.xlu0 %v1684
      %v1738 = vpop.xlane.xlu0 %1737
      %1739 = vadd.xlane.f32.xlu0 %v1689
      %v1740 = vpop.xlane.xlu0 %1739
      %1741 = vadd.xlane.f32.xlu0 %v1692
      %v1742 = vpop.xlane.xlu0 %1741
      %1743 = vadd.xlane.f32.xlu0 %v1697
      %v1744 = vpop.xlane.xlu0 %1743
      %1745 = vadd.xlane.f32.xlu0 %v1700
      %v1746 = vpop.xlane.xlu0 %1745
      %1747 = vadd.xlane.f32.xlu0 %v1705
      %v1748 = vpop.xlane.xlu0 %1747
      %1749 = vadd.xlane.f32.xlu0 %v1708
      %v1750 = vpop.xlane.xlu0 %1749
      %1751 = vadd.xlane.f32.xlu0 %v1713
      %v1752 = vpop.xlane.xlu0 %1751
      %1753 = vadd.xlane.f32.xlu0 %v1716
      %v1754 = vpop.xlane.xlu0 %1753
      %1755 = vadd.xlane.f32.xlu0 %v1721
      %v1756 = vpop.xlane.xlu0 %1755
      %1757 = vadd.xlane.f32.xlu0 %v1724
      %v1758 = vpop.xlane.xlu0 %1757
      %v1759 = vsel %vm508, %v1665, 0.0
      %v1760 = vsel %vm508, %v1668, 0.0
      %v1761 = vsel %vm508, %v1673, 0.0
      %v1762 = vsel %vm508, %v1676, 0.0
      %v1763 = vsel %vm508, %v1681, 0.0
      %v1764 = vsel %vm508, %v1684, 0.0
      %v1765 = vsel %vm508, %v1689, 0.0
      %v1766 = vsel %vm508, %v1692, 0.0
      %v1767 = vsel %vm508, %v1697, 0.0
      %v1768 = vsel %vm508, %v1700, 0.0
      %v1769 = vsel %vm508, %v1705, 0.0
      %v1770 = vsel %vm508, %v1708, 0.0
      %v1771 = vsel %vm508, %v1713, 0.0
      %v1772 = vsel %vm508, %v1716, 0.0
      %v1773 = vsel %vm508, %v1721, 0.0
      %v1774 = vsel %vm508, %v1724, 0.0
      %1775 = vadd.xlane.f32.xlu0 %v1759
      %v1776 = vpop.xlane.xlu0 %1775
      %1777 = vadd.xlane.f32.xlu0 %v1760
      %v1778 = vpop.xlane.xlu0 %1777
      %1779 = vadd.xlane.f32.xlu0 %v1761
      %v1780 = vpop.xlane.xlu0 %1779
      %1781 = vadd.xlane.f32.xlu0 %v1762
      %v1782 = vpop.xlane.xlu0 %1781
      %1783 = vadd.xlane.f32.xlu0 %v1763
      %v1784 = vpop.xlane.xlu0 %1783
      %1785 = vadd.xlane.f32.xlu0 %v1764
      %v1786 = vpop.xlane.xlu0 %1785
      %1787 = vadd.xlane.f32.xlu0 %v1765
      %v1788 = vpop.xlane.xlu0 %1787
      %1789 = vadd.xlane.f32.xlu0 %v1766
      %v1790 = vpop.xlane.xlu0 %1789
      %1791 = vadd.xlane.f32.xlu0 %v1767
      %v1792 = vpop.xlane.xlu0 %1791
      %1793 = vadd.xlane.f32.xlu0 %v1768
      %v1794 = vpop.xlane.xlu0 %1793
      %1795 = vadd.xlane.f32.xlu0 %v1769
      %v1796 = vpop.xlane.xlu0 %1795
      %1797 = vadd.xlane.f32.xlu0 %v1770
      %v1798 = vpop.xlane.xlu0 %1797
      %1799 = vadd.xlane.f32.xlu0 %v1771
      %v1800 = vpop.xlane.xlu0 %1799
      %1801 = vadd.xlane.f32.xlu0 %v1772
      %v1802 = vpop.xlane.xlu0 %1801
      %1803 = vadd.xlane.f32.xlu0 %v1773
      %v1804 = vpop.xlane.xlu0 %1803
      %1805 = vadd.xlane.f32.xlu0 %v1774
      %v1806 = vpop.xlane.xlu0 %1805
      %v1807 = vsub.f32 %v1728, %v1776
      %v1808 = vsub.f32 %v1730, %v1778
      %v1809 = vsub.f32 %v1732, %v1780
      %v1810 = vsub.f32 %v1734, %v1782
      %v1811 = vsub.f32 %v1736, %v1784
      %v1812 = vsub.f32 %v1738, %v1786
      %v1813 = vsub.f32 %v1740, %v1788
      %v1814 = vsub.f32 %v1742, %v1790
      %v1815 = vsub.f32 %v1744, %v1792
      %v1816 = vsub.f32 %v1746, %v1794
      %v1817 = vsub.f32 %v1748, %v1796
      %v1818 = vsub.f32 %v1750, %v1798
      %v1819 = vsub.f32 %v1752, %v1800
      %v1820 = vsub.f32 %v1754, %v1802
      %v1821 = vsub.f32 %v1756, %v1804
      %v1822 = vsub.f32 %v1758, %v1806
      %v1823 = vsel %vm508, %v1776, %v1807
      %v1824 = vsel %vm508, %v1778, %v1808
      %v1825 = vsel %vm508, %v1780, %v1809
      %v1826 = vsel %vm508, %v1782, %v1810
      %v1827 = vsel %vm508, %v1784, %v1811
      %v1828 = vsel %vm508, %v1786, %v1812
      %v1829 = vsel %vm508, %v1788, %v1813
      %v1830 = vsel %vm508, %v1790, %v1814
      %v1831 = vsel %vm508, %v1792, %v1815
      %v1832 = vsel %vm508, %v1794, %v1816
      %v1833 = vsel %vm508, %v1796, %v1817
      %v1834 = vsel %vm508, %v1798, %v1818
      %v1835 = vsel %vm508, %v1800, %v1819
      %v1836 = vsel %vm508, %v1802, %v1820
      %v1837 = vsel %vm508, %v1804, %v1821
      %v1838 = vsel %vm508, %v1806, %v1822
      %v1839 = vmul.f32 %v1823, 0.015625
      %v1840 = vmul.f32 %v1824, 0.015625
      %v1841 = vmul.f32 %v1825, 0.015625
      %v1842 = vmul.f32 %v1826, 0.015625
      %v1843 = vmul.f32 %v1827, 0.015625
      %v1844 = vmul.f32 %v1828, 0.015625
      %v1845 = vmul.f32 %v1829, 0.015625
      %v1846 = vmul.f32 %v1830, 0.015625
      %v1847 = vmul.f32 %v1831, 0.015625
      %v1848 = vmul.f32 %v1832, 0.015625
      %v1849 = vmul.f32 %v1833, 0.015625
      %v1850 = vmul.f32 %v1834, 0.015625
      %v1851 = vmul.f32 %v1835, 0.015625
      %v1852 = vmul.f32 %v1836, 0.015625
      %v1853 = vmul.f32 %v1837, 0.015625
      %v1854 = vmul.f32 %v1838, 0.015625
      %v1855 = vmul.f32 %v1665, %v1665
      %v1856 = vmul.f32 %v1668, %v1668
      %v1857 = vmul.f32 %v1673, %v1673
      %v1858 = vmul.f32 %v1676, %v1676
      %v1859 = vmul.f32 %v1681, %v1681
      %v1860 = vmul.f32 %v1684, %v1684
      %v1861 = vmul.f32 %v1689, %v1689
      %v1862 = vmul.f32 %v1692, %v1692
      %v1863 = vmul.f32 %v1697, %v1697
      %v1864 = vmul.f32 %v1700, %v1700
      %v1865 = vmul.f32 %v1705, %v1705
      %v1866 = vmul.f32 %v1708, %v1708
      %v1867 = vmul.f32 %v1713, %v1713
      %v1868 = vmul.f32 %v1716, %v1716
      %v1869 = vmul.f32 %v1721, %v1721
      %v1870 = vmul.f32 %v1724, %v1724
      %1871 = vadd.xlane.f32.xlu0 %v1855
      %v1872 = vpop.xlane.xlu0 %1871
      %1873 = vadd.xlane.f32.xlu0 %v1856
      %v1874 = vpop.xlane.xlu0 %1873
      %1875 = vadd.xlane.f32.xlu0 %v1857
      %v1876 = vpop.xlane.xlu0 %1875
      %1877 = vadd.xlane.f32.xlu0 %v1858
      %v1878 = vpop.xlane.xlu0 %1877
      %1879 = vadd.xlane.f32.xlu0 %v1859
      %v1880 = vpop.xlane.xlu0 %1879
      %1881 = vadd.xlane.f32.xlu0 %v1860
      %v1882 = vpop.xlane.xlu0 %1881
      %1883 = vadd.xlane.f32.xlu0 %v1861
      %v1884 = vpop.xlane.xlu0 %1883
      %1885 = vadd.xlane.f32.xlu0 %v1862
      %v1886 = vpop.xlane.xlu0 %1885
      %1887 = vadd.xlane.f32.xlu0 %v1863
      %v1888 = vpop.xlane.xlu0 %1887
      %1889 = vadd.xlane.f32.xlu0 %v1864
      %v1890 = vpop.xlane.xlu0 %1889
      %1891 = vadd.xlane.f32.xlu0 %v1865
      %v1892 = vpop.xlane.xlu0 %1891
      %1893 = vadd.xlane.f32.xlu0 %v1866
      %v1894 = vpop.xlane.xlu0 %1893
      %1895 = vadd.xlane.f32.xlu0 %v1867
      %v1896 = vpop.xlane.xlu0 %1895
      %1897 = vadd.xlane.f32.xlu0 %v1868
      %v1898 = vpop.xlane.xlu0 %1897
      %1899 = vadd.xlane.f32.xlu0 %v1869
      %v1900 = vpop.xlane.xlu0 %1899
      %1901 = vadd.xlane.f32.xlu0 %v1870
      %v1902 = vpop.xlane.xlu0 %1901
      %v1903 = vsel %vm508, %v1855, 0.0
      %v1904 = vsel %vm508, %v1856, 0.0
      %v1905 = vsel %vm508, %v1857, 0.0
      %v1906 = vsel %vm508, %v1858, 0.0
      %v1907 = vsel %vm508, %v1859, 0.0
      %v1908 = vsel %vm508, %v1860, 0.0
      %v1909 = vsel %vm508, %v1861, 0.0
      %v1910 = vsel %vm508, %v1862, 0.0
      %v1911 = vsel %vm508, %v1863, 0.0
      %v1912 = vsel %vm508, %v1864, 0.0
      %v1913 = vsel %vm508, %v1865, 0.0
      %v1914 = vsel %vm508, %v1866, 0.0
      %v1915 = vsel %vm508, %v1867, 0.0
      %v1916 = vsel %vm508, %v1868, 0.0
      %v1917 = vsel %vm508, %v1869, 0.0
      %v1918 = vsel %vm508, %v1870, 0.0
      %1919 = vadd.xlane.f32.xlu0 %v1903
      %v1920 = vpop.xlane.xlu0 %1919
      %1921 = vadd.xlane.f32.xlu0 %v1904
      %v1922 = vpop.xlane.xlu0 %1921
      %1923 = vadd.xlane.f32.xlu0 %v1905
      %v1924 = vpop.xlane.xlu0 %1923
      %1925 = vadd.xlane.f32.xlu0 %v1906
      %v1926 = vpop.xlane.xlu0 %1925
      %1927 = vadd.xlane.f32.xlu0 %v1907
      %v1928 = vpop.xlane.xlu0 %1927
      %1929 = vadd.xlane.f32.xlu0 %v1908
      %v1930 = vpop.xlane.xlu0 %1929
      %1931 = vadd.xlane.f32.xlu0 %v1909
      %v1932 = vpop.xlane.xlu0 %1931
      %1933 = vadd.xlane.f32.xlu0 %v1910
      %v1934 = vpop.xlane.xlu0 %1933
      %1935 = vadd.xlane.f32.xlu0 %v1911
      %v1936 = vpop.xlane.xlu0 %1935
      %1937 = vadd.xlane.f32.xlu0 %v1912
      %v1938 = vpop.xlane.xlu0 %1937
      %1939 = vadd.xlane.f32.xlu0 %v1913
      %v1940 = vpop.xlane.xlu0 %1939
      %1941 = vadd.xlane.f32.xlu0 %v1914
      %v1942 = vpop.xlane.xlu0 %1941
      %1943 = vadd.xlane.f32.xlu0 %v1915
      %v1944 = vpop.xlane.xlu0 %1943
      %1945 = vadd.xlane.f32.xlu0 %v1916
      %v1946 = vpop.xlane.xlu0 %1945
      %1947 = vadd.xlane.f32.xlu0 %v1917
      %v1948 = vpop.xlane.xlu0 %1947
      %1949 = vadd.xlane.f32.xlu0 %v1918
      %v1950 = vpop.xlane.xlu0 %1949
      %v1951 = vsub.f32 %v1872, %v1920
      %v1952 = vsub.f32 %v1874, %v1922
      %v1953 = vsub.f32 %v1876, %v1924
      %v1954 = vsub.f32 %v1878, %v1926
      %v1955 = vsub.f32 %v1880, %v1928
      %v1956 = vsub.f32 %v1882, %v1930
      %v1957 = vsub.f32 %v1884, %v1932
      %v1958 = vsub.f32 %v1886, %v1934
      %v1959 = vsub.f32 %v1888, %v1936
      %v1960 = vsub.f32 %v1890, %v1938
      %v1961 = vsub.f32 %v1892, %v1940
      %v1962 = vsub.f32 %v1894, %v1942
      %v1963 = vsub.f32 %v1896, %v1944
      %v1964 = vsub.f32 %v1898, %v1946
      %v1965 = vsub.f32 %v1900, %v1948
      %v1966 = vsub.f32 %v1902, %v1950
      %v1967 = vsel %vm508, %v1920, %v1951
      %v1968 = vsel %vm508, %v1922, %v1952
      %v1969 = vsel %vm508, %v1924, %v1953
      %v1970 = vsel %vm508, %v1926, %v1954
      %v1971 = vsel %vm508, %v1928, %v1955
      %v1972 = vsel %vm508, %v1930, %v1956
      %v1973 = vsel %vm508, %v1932, %v1957
      %v1974 = vsel %vm508, %v1934, %v1958
      %v1975 = vsel %vm508, %v1936, %v1959
      %v1976 = vsel %vm508, %v1938, %v1960
      %v1977 = vsel %vm508, %v1940, %v1961
      %v1978 = vsel %vm508, %v1942, %v1962
      %v1979 = vsel %vm508, %v1944, %v1963
      %v1980 = vsel %vm508, %v1946, %v1964
      %v1981 = vsel %vm508, %v1948, %v1965
      %v1982 = vsel %vm508, %v1950, %v1966
      %v1983 = vmul.f32 %v1967, 0.015625
      %v1984 = vmul.f32 %v1968, 0.015625
      %v1985 = vmul.f32 %v1969, 0.015625
      %v1986 = vmul.f32 %v1970, 0.015625
      %v1987 = vmul.f32 %v1971, 0.015625
      %v1988 = vmul.f32 %v1972, 0.015625
      %v1989 = vmul.f32 %v1973, 0.015625
      %v1990 = vmul.f32 %v1974, 0.015625
      %v1991 = vmul.f32 %v1975, 0.015625
      %v1992 = vmul.f32 %v1976, 0.015625
      %v1993 = vmul.f32 %v1977, 0.015625
      %v1994 = vmul.f32 %v1978, 0.015625
      %v1995 = vmul.f32 %v1979, 0.015625
      %v1996 = vmul.f32 %v1980, 0.015625
      %v1997 = vmul.f32 %v1981, 0.015625
      %v1998 = vmul.f32 %v1982, 0.015625
      %v1999 = vmul.f32 %v1839, %v1839
      %v2000 = vmul.f32 %v1840, %v1840
      %v2001 = vmul.f32 %v1841, %v1841
      %v2002 = vmul.f32 %v1842, %v1842
      %v2003 = vmul.f32 %v1843, %v1843
      %v2004 = vmul.f32 %v1844, %v1844
      %v2005 = vmul.f32 %v1845, %v1845
      %v2006 = vmul.f32 %v1846, %v1846
      %v2007 = vmul.f32 %v1847, %v1847
      %v2008 = vmul.f32 %v1848, %v1848
      %v2009 = vmul.f32 %v1849, %v1849
      %v2010 = vmul.f32 %v1850, %v1850
      %v2011 = vmul.f32 %v1851, %v1851
      %v2012 = vmul.f32 %v1852, %v1852
      %v2013 = vmul.f32 %v1853, %v1853
      %v2014 = vmul.f32 %v1854, %v1854
      %v2015 = vsub.f32 %v1983, %v1999
      %v2016 = vsub.f32 %v1984, %v2000
      %v2017 = vsub.f32 %v1985, %v2001
      %v2018 = vsub.f32 %v1986, %v2002
      %v2019 = vsub.f32 %v1987, %v2003
      %v2020 = vsub.f32 %v1988, %v2004
      %v2021 = vsub.f32 %v1989, %v2005
      %v2022 = vsub.f32 %v1990, %v2006
      %v2023 = vsub.f32 %v1991, %v2007
      %v2024 = vsub.f32 %v1992, %v2008
      %v2025 = vsub.f32 %v1993, %v2009
      %v2026 = vsub.f32 %v1994, %v2010
      %v2027 = vsub.f32 %v1995, %v2011
      %v2028 = vsub.f32 %v1996, %v2012
      %v2029 = vsub.f32 %v1997, %v2013
      %v2030 = vsub.f32 %v1998, %v2014
      %v2031 = vsub.f32 %v1665, %v1839
      %v2032 = vsub.f32 %v1668, %v1840
      %v2033 = vsub.f32 %v1673, %v1841
      %v2034 = vsub.f32 %v1676, %v1842
      %v2035 = vsub.f32 %v1681, %v1843
      %v2036 = vsub.f32 %v1684, %v1844
      %v2037 = vsub.f32 %v1689, %v1845
      %v2038 = vsub.f32 %v1692, %v1846
      %v2039 = vsub.f32 %v1697, %v1847
      %v2040 = vsub.f32 %v1700, %v1848
      %v2041 = vsub.f32 %v1705, %v1849
      %v2042 = vsub.f32 %v1708, %v1850
      %v2043 = vsub.f32 %v1713, %v1851
      %v2044 = vsub.f32 %v1716, %v1852
      %v2045 = vsub.f32 %v1721, %v1853
      %v2046 = vsub.f32 %v1724, %v1854
      %v2047 = vadd.f32 %v2015, 1e-05
      %v2048 = vadd.f32 %v2016, 1e-05
      %v2049 = vadd.f32 %v2017, 1e-05
      %v2050 = vadd.f32 %v2018, 1e-05
      %v2051 = vadd.f32 %v2019, 1e-05
      %v2052 = vadd.f32 %v2020, 1e-05
      %v2053 = vadd.f32 %v2021, 1e-05
      %v2054 = vadd.f32 %v2022, 1e-05
      %v2055 = vadd.f32 %v2023, 1e-05
      %v2056 = vadd.f32 %v2024, 1e-05
      %v2057 = vadd.f32 %v2025, 1e-05
      %v2058 = vadd.f32 %v2026, 1e-05
      %v2059 = vadd.f32 %v2027, 1e-05
      %v2060 = vadd.f32 %v2028, 1e-05
      %v2061 = vadd.f32 %v2029, 1e-05
      %v2062 = vadd.f32 %v2030, 1e-05
      %v2063 = vrsqrt.pop %v2047
      %v2064 = vrsqrt.pop %v2048
      %v2065 = vrsqrt.pop %v2049
      %v2066 = vrsqrt.pop %v2050
      %v2067 = vrsqrt.pop %v2051
      %v2068 = vrsqrt.pop %v2052
      %v2069 = vrsqrt.pop %v2053
      %v2070 = vrsqrt.pop %v2054
      %v2071 = vrsqrt.pop %v2055
      %v2072 = vrsqrt.pop %v2056
      %v2073 = vrsqrt.pop %v2057
      %v2074 = vrsqrt.pop %v2058
      %v2075 = vrsqrt.pop %v2059
      %v2076 = vrsqrt.pop %v2060
      %v2077 = vrsqrt.pop %v2061
      %v2078 = vrsqrt.pop %v2062
      %v2079 = vmul.f32 %v2031, %v2063
      %v2080 = vmul.f32 %v2032, %v2064
      %v2081 = vmul.f32 %v2033, %v2065
      %v2082 = vmul.f32 %v2034, %v2066
      %v2083 = vmul.f32 %v2035, %v2067
      %v2084 = vmul.f32 %v2036, %v2068
      %v2085 = vmul.f32 %v2037, %v2069
      %v2086 = vmul.f32 %v2038, %v2070
      %v2087 = vmul.f32 %v2039, %v2071
      %v2088 = vmul.f32 %v2040, %v2072
      %v2089 = vmul.f32 %v2041, %v2073
      %v2090 = vmul.f32 %v2042, %v2074
      %v2091 = vmul.f32 %v2043, %v2075
      %v2092 = vmul.f32 %v2044, %v2076
      %v2093 = vmul.f32 %v2045, %v2077
      %v2094 = vmul.f32 %v2046, %v2078
      %v2095 = vlaneseq
      %v2096 = vshrl.u32 %v2095, 7
      %v2097 = vsub.s32 4, %v2096
      %v2098 = vrot.slane %v232, %v2097
      %v2099 = vmul.f32 %v2079, %v2098
      %v2100 = vmul.f32 %v2080, %v2098
      %v2101 = vmul.f32 %v2081, %v2098
      %v2102 = vmul.f32 %v2082, %v2098
      %v2103 = vmul.f32 %v2083, %v2098
      %v2104 = vmul.f32 %v2084, %v2098
      %v2105 = vmul.f32 %v2085, %v2098
      %v2106 = vmul.f32 %v2086, %v2098
      %v2107 = vmul.f32 %v2087, %v2098
      %v2108 = vmul.f32 %v2088, %v2098
      %v2109 = vmul.f32 %v2089, %v2098
      %v2110 = vmul.f32 %v2090, %v2098
      %v2111 = vmul.f32 %v2091, %v2098
      %v2112 = vmul.f32 %v2092, %v2098
      %v2113 = vmul.f32 %v2093, %v2098
      %v2114 = vmul.f32 %v2094, %v2098
      %v2115 = vlaneseq
      %v2116 = vshrl.u32 %v2115, 7
      %v2117 = vsub.s32 5, %v2116
      %v2118 = vrot.slane %v232, %v2117
      %v2119 = vadd.f32 %v2099, %v2118
      %v2120 = vadd.f32 %v2100, %v2118
      %v2121 = vadd.f32 %v2101, %v2118
      %v2122 = vadd.f32 %v2102, %v2118
      %v2123 = vadd.f32 %v2103, %v2118
      %v2124 = vadd.f32 %v2104, %v2118
      %v2125 = vadd.f32 %v2105, %v2118
      %v2126 = vadd.f32 %v2106, %v2118
      %v2127 = vadd.f32 %v2107, %v2118
      %v2128 = vadd.f32 %v2108, %v2118
      %v2129 = vadd.f32 %v2109, %v2118
      %v2130 = vadd.f32 %v2110, %v2118
      %v2131 = vadd.f32 %v2111, %v2118
      %v2132 = vadd.f32 %v2112, %v2118
      %v2133 = vadd.f32 %v2113, %v2118
      %v2134 = vadd.f32 %v2114, %v2118
      %v2135 = vadd.f32 %v2119, %v399
      %v2136 = vadd.f32 %v2120, %v403
      %v2137 = vadd.f32 %v2121, %v409
      %v2138 = vadd.f32 %v2122, %v413
      %v2139 = vadd.f32 %v2123, %v419
      %v2140 = vadd.f32 %v2124, %v423
      %v2141 = vadd.f32 %v2125, %v429
      %v2142 = vadd.f32 %v2126, %v433
      %v2143 = vadd.f32 %v2127, %v439
      %v2144 = vadd.f32 %v2128, %v443
      %v2145 = vadd.f32 %v2129, %v449
      %v2146 = vadd.f32 %v2130, %v453
      %v2147 = vadd.f32 %v2131, %v459
      %v2148 = vadd.f32 %v2132, %v463
      %v2149 = vadd.f32 %v2133, %v469
      %v2150 = vadd.f32 %v2134, %v473
      %vm2151 = vcmp.ge.f32.partialorder %v2135, 0.0
      %vm2152 = vcmp.ge.f32.partialorder %v2136, 0.0
      %vm2153 = vcmp.ge.f32.partialorder %v2137, 0.0
      %vm2154 = vcmp.ge.f32.partialorder %v2138, 0.0
      %vm2155 = vcmp.ge.f32.partialorder %v2139, 0.0
      %vm2156 = vcmp.ge.f32.partialorder %v2140, 0.0
      %vm2157 = vcmp.ge.f32.partialorder %v2141, 0.0
      %vm2158 = vcmp.ge.f32.partialorder %v2142, 0.0
      %vm2159 = vcmp.ge.f32.partialorder %v2143, 0.0
      %vm2160 = vcmp.ge.f32.partialorder %v2144, 0.0
      %vm2161 = vcmp.ge.f32.partialorder %v2145, 0.0
      %vm2162 = vcmp.ge.f32.partialorder %v2146, 0.0
      %vm2163 = vcmp.ge.f32.partialorder %v2147, 0.0
      %vm2164 = vcmp.ge.f32.partialorder %v2148, 0.0
      %vm2165 = vcmp.ge.f32.partialorder %v2149, 0.0
      %vm2166 = vcmp.ge.f32.partialorder %v2150, 0.0
      %v2167 = vmul.f32 %v2135, 0.2
      %v2168 = vmul.f32 %v2136, 0.2
      %v2169 = vmul.f32 %v2137, 0.2
      %v2170 = vmul.f32 %v2138, 0.2
      %v2171 = vmul.f32 %v2139, 0.2
      %v2172 = vmul.f32 %v2140, 0.2
      %v2173 = vmul.f32 %v2141, 0.2
      %v2174 = vmul.f32 %v2142, 0.2
      %v2175 = vmul.f32 %v2143, 0.2
      %v2176 = vmul.f32 %v2144, 0.2
      %v2177 = vmul.f32 %v2145, 0.2
      %v2178 = vmul.f32 %v2146, 0.2
      %v2179 = vmul.f32 %v2147, 0.2
      %v2180 = vmul.f32 %v2148, 0.2
      %v2181 = vmul.f32 %v2149, 0.2
      %v2182 = vmul.f32 %v2150, 0.2
      %v2183 = vsel %vm2151, %v2135, %v2167
      %v2184 = vsel %vm2152, %v2136, %v2168
      %v2185 = vsel %vm2153, %v2137, %v2169
      %v2186 = vsel %vm2154, %v2138, %v2170
      %v2187 = vsel %vm2155, %v2139, %v2171
      %v2188 = vsel %vm2156, %v2140, %v2172
      %v2189 = vsel %vm2157, %v2141, %v2173
      %v2190 = vsel %vm2158, %v2142, %v2174
      %v2191 = vsel %vm2159, %v2143, %v2175
      %v2192 = vsel %vm2160, %v2144, %v2176
      %v2193 = vsel %vm2161, %v2145, %v2177
      %v2194 = vsel %vm2162, %v2146, %v2178
      %v2195 = vsel %vm2163, %v2147, %v2179
      %v2196 = vsel %vm2164, %v2148, %v2180
      %v2197 = vsel %vm2165, %v2149, %v2181
      %v2198 = vsel %vm2166, %v2150, %v2182
      %2199 = vst [vmem:[%s226] sm:$0xff] %v2183
      %2200 = vst [vmem:[%s226 + $0x8] sm:$0xff] %v2184
      %2201 = vst [vmem:[%s226 + $0x10] sm:$0xff] %v2185
      %2202 = vst [vmem:[%s226 + $0x18] sm:$0xff] %v2186
      %2203 = vst [vmem:[%s226 + $0x20] sm:$0xff] %v2187
      %2204 = vst [vmem:[%s226 + $0x28] sm:$0xff] %v2188
      %2205 = vst [vmem:[%s226 + $0x30] sm:$0xff] %v2189
      %2206 = vst [vmem:[%s226 + $0x38] sm:$0xff] %v2190
      %2207 = vst [vmem:[%s226 + $0x40] sm:$0xff] %v2191
      %2208 = vst [vmem:[%s226 + $0x48] sm:$0xff] %v2192
      %2209 = vst [vmem:[%s226 + $0x50] sm:$0xff] %v2193
      %2210 = vst [vmem:[%s226 + $0x58] sm:$0xff] %v2194
      %2211 = vst [vmem:[%s226 + $0x60] sm:$0xff] %v2195
      %2212 = vst [vmem:[%s226 + $0x68] sm:$0xff] %v2196
      %2213 = vst [vmem:[%s226 + $0x70] sm:$0xff] %v2197
      %2214 = vst [vmem:[%s226 + $0x78] sm:$0xff] %v2198
      %s2215 = smul.u32 16, %s16
      %p2216 = scmp.lt.s32.totalorder %s2215, 31
      %s2217 = scalar_select %p2216, %s2215, 31
      %s2218 = smul.addr %s2217, 8
      %s2219 = scalar_lea.vmem %s5, %s2218
      // Predicated region
      $region41: #{fcres_block.1} parent=39 // pred_check
        %p2220 = pneg %p144
      $region42: #{fcres_block.1} parent=39 // pred_check_branch
        %2222 = sbr.rel (%p2220) target = $region44
      $region43: #{fcres_block.1} parent=39 // pred_region
        %s2223 = smul.u32 16, %s16
      $region44: #{fcres_block.1} parent=39 // pred_fallthru
        _
    $region40: #{fcres_block.1} parent=5 // pred_fallthru
      _
    %p2224 = scmp.le.s32.totalorder 2, %s11
    // Predicated region
    $region45: #{fcres_block.1} parent=5 // pred_check
      %p2225 = pneg %p2224
    $region46: #{fcres_block.1} parent=5 // pred_check_branch
      %2227 = sbr.rel (%p2225) target = $region48
    $region47: #{fcres_block.1} parent=5 // pred_region
      %s2228 = ssub.s32 %s11, 2
      // Predicated region
      $region49: #{fcres_block.1} parent=47 // pred_check
        %p2229 = pneg %p150
      $region50: #{fcres_block.1} parent=47 // pred_check_branch
        %2231 = sbr.rel (%p2229) target = $region52
      $region51: #{fcres_block.1} parent=47 // pred_region
        %s2232 = smul.u32 16, %s17
        %p2233 = scmp.lt.s32.totalorder %s2232, 31
        %s2234 = scalar_select %p2233, %s2232, 31
        %s2235 = smul.addr %s2234, 8
        %s2236 = scalar_lea.vmem %s5, %s2235
      $region52: #{fcres_block.1} parent=47 // pred_fallthru
        _
    $region48: #{fcres_block.1} parent=5 // pred_fallthru
      _
  $region6: #{fcres_block.1} parent=0 // loop_footer
    %s15 = sadd.s32 1, %s11
  $region7: #{fcres_block.1} parent=0 // loop_footer_branch
    %10 = sbr.rel target = $region3
  $region8: #{fcres_block.1} parent=0 // loop_exit
    _

</llo_original>
